<compile_context>
chip_gen: v6e
topology: v6e:2x2x1
jax: 0.10.0
libtpu: 0.0.40
codegen_flags: <defaults>
</compile_context>

<pallas_src>
import functools

import jax
import jax.numpy as jnp
from jax.experimental import pallas as pl
from jax.experimental.pallas import tpu as pltpu

LEAKY_SLOPE = 0.01      # nn.LeakyReLU() default negative_slope
LANE = 128
PACK = 16               # bf16 sublane packing granularity (2nd-minor dim)
NEG_BIG = -1e30         # pad-lane bias: exp(NEG_BIG - max) underflows to exactly 0
H1, H2, H3 = 1024, 512, 256


def _round_up(n, m):
    return ((n + m - 1) // m) * m


@functools.lru_cache(maxsize=None)
def _vpu_supports_bf16() -> bool:
    """True on chips whose VPU has native bf16 elementwise ops (v6e, TPU7x)."""
    try:
        kind = jax.devices()[0].device_kind.lower()
    except Exception:
        return False
    return not any(tag in kind for tag in ("v2", "v3", "v4", "v5"))


@functools.lru_cache(maxsize=None)
def _tensorcores_per_device() -> int:
    """TensorCores exposed per JAX device (megacore v4 / v5p / TPU7x -> 2)."""
    try:
        dev = jax.devices()[0]
        cores = getattr(dev, "num_cores", None)
        if isinstance(cores, int) and cores > 0:
            return cores
        kind = dev.device_kind.lower()
    except Exception:
        return 1
    if ("v4" in kind) or ("v5p" in kind) or ("7" in kind):
        return 2
    return 1


def actor_kernel(x_ref,
                 w1_ref, b1_ref,
                 w2_ref, b2_ref,
                 w3_ref, b3_ref,
                 w4_ref, b4_ref,
                 out_ref, *, bf16_act):
    """Fused forward pass for one batch tile.

    x is bf16 (cast once in the wrapper); weights are bf16 and resident in
    VMEM (constant block index across the batch grid); matmuls accumulate in
    f32 on the MXU.  LeakyReLU runs in bf16 on bf16-capable VPUs, else f32.
    """

    def act(h_f32):
        # LeakyReLU with slope < 1  ==  max(x, slope * x): 2 VALU ops, not 3.
        if bf16_act:
            hb = h_f32.astype(jnp.bfloat16)
            return jnp.maximum(hb, LEAKY_SLOPE * hb)          # stays bf16
        return jnp.maximum(h_f32, LEAKY_SLOPE * h_f32).astype(jnp.bfloat16)

    # Layer 1
    h = act(jnp.dot(x_ref[...], w1_ref[...],
                    preferred_element_type=jnp.float32) + b1_ref[...])
    # Layer 2
    h = act(jnp.dot(h, w2_ref[...],
                    preferred_element_type=jnp.float32) + b2_ref[...])
    # Layer 3
    h = act(jnp.dot(h, w3_ref[...],
                    preferred_element_type=jnp.float32) + b3_ref[...])
    # Layer 4 (output padded to a lane-dense width; pad-lane bias = -1e30)
    logits = jnp.dot(h, w4_ref[...],
                     preferred_element_type=jnp.float32) + b4_ref[...]

    # Numerically-stable softmax over the feature axis (PyTorch dim=1).
    # Pad lanes carry logit == -1e30 -> exp == 0 -> no effect on max/sum.
    m = jnp.max(logits, axis=1, keepdims=True)
    e = jnp.exp(logits - m)
    denom = jnp.sum(e, axis=1, keepdims=True)
    # Exact divide (not the approx EUP reciprocal): downstream PPO math
    # (log-prob / Categorical sampling / entropy) assumes rows sum to 1 at
    # f32 accuracy.
    out_ref[...] = (e / denom).astype(out_ref.dtype)


def init_params(key, input_dim, output_dim):
    """PyTorch-style uniform(-1/sqrt(fan_in), 1/sqrt(fan_in)) init, in f32.

    Weights are pre-transposed to (in_features, out_features); biases are
    (1, out_features) for in-kernel broadcasting.
    """
    dims = [(input_dim, H1), (H1, H2), (H2, H3), (H3, output_dim)]
    params = {}
    for idx, (fan_in, fan_out) in enumerate(dims, start=1):
        key, kw, kb = jax.random.split(key, 3)
        bound = 1.0 / jnp.sqrt(jnp.float32(fan_in))
        params[f"w{idx}"] = jax.random.uniform(
            kw, (fan_in, fan_out), jnp.float32, minval=-bound, maxval=bound)
        params[f"b{idx}"] = jax.random.uniform(
            kb, (1, fan_out), jnp.float32, minval=-bound, maxval=bound)
    return params


def prepare_params(params):
    """Cast weights to bf16 and pad the last layer to a lane-dense width.

    Done once outside the kernel so there is no per-call conversion traffic.
    """
    output_dim = params["w4"].shape[1]
    out_pad = _round_up(max(output_dim, LANE), LANE)

    w4p = jnp.zeros((params["w4"].shape[0], out_pad), jnp.bfloat16)
    w4p = w4p.at[:, :output_dim].set(params["w4"].astype(jnp.bfloat16))
    b4p = jnp.full((1, out_pad), NEG_BIG, jnp.float32)
    b4p = b4p.at[:, :output_dim].set(params["b4"])

    return {
        "w1": params["w1"].astype(jnp.bfloat16), "b1": params["b1"],
        "w2": params["w2"].astype(jnp.bfloat16), "b2": params["b2"],
        "w3": params["w3"].astype(jnp.bfloat16), "b3": params["b3"],
        "w4": w4p, "b4": b4p,
        "output_dim": output_dim,
    }


def actor_forward(x, prepared, *, batch_tile=512, out_dtype=jnp.float32):
    """x: (B, input_dim). prepared: output of prepare_params().

    batch_tile caps the rows per grid step.  512 is a good default on every
    generation; 1024 is also safe on v6e/v7x for very large B because
    vmem_limit_bytes below scales with the tile.
    """
    B, input_dim = x.shape
    output_dim = prepared["output_dim"]
    out_pad = prepared["w4"].shape[1]

    # ---- batch-tile selection --------------------------------------------
    bt_cap = max(PACK, _round_up(int(batch_tile), PACK))
    num_tiles = max(1, pl.cdiv(B, bt_cap))
    n_tc = _tensorcores_per_device()
    if n_tc > 1:
        # Guarantee >= n_tc grid steps whenever B allows, so every TensorCore
        # gets work; the bf16 weights (~1.4 MB) are cheap to keep resident.
        num_tiles = max(num_tiles, min(n_tc, pl.cdiv(B, PACK)))
    bt = _round_up(pl.cdiv(B, num_tiles), PACK)   # multiple of 16: bf16 packing

    B_pad = _round_up(B, bt)
    xb = x.astype(jnp.bfloat16)                   # cast once: halves input DMA
    if B_pad != B:
        xb = jnp.pad(xb, ((0, B_pad - B), (0, 0)))
    grid = (B_pad // bt,)

    # ---- scoped-VMEM limit -------------------------------------------------
    # Conservative upper bound on live VMEM (double-buffered x/out tiles,
    # resident bf16 weights x2 buffers, f32 intermediates + bf16 copies),
    # x2 margin, floor 32 MiB (v6e/v7x default), cap 48 MiB (safe on v7x's
    # 64 MiB total VMEM).  Keeps v5e's 16 MiB scoped default from ever
    # binding when batch_tile is pushed up.
    w_bytes = 2 * 2 * (input_dim * H1 + H1 * H2 + H2 * H3 + H3 * out_pad)
    io_bytes = 2 * bt * (2 * input_dim + jnp.dtype(out_dtype).itemsize * out_pad)
    act_bytes = 6 * bt * (H1 + H2 + H3 + 2 * out_pad)
    vmem_limit = int(max(32 << 20,
                         min(2 * (w_bytes + io_bytes + act_bytes), 48 << 20)))

    def const2d(arr):
        # Constant block index -> fetched once, resident across the batch grid.
        return pl.BlockSpec(arr.shape, lambda i: (0, 0))

    kernel = functools.partial(actor_kernel, bf16_act=_vpu_supports_bf16())

    out_padded = pl.pallas_call(
        kernel,
        out_shape=jax.ShapeDtypeStruct((B_pad, out_pad), out_dtype),
        grid_spec=pltpu.PrefetchScalarGridSpec(
            num_scalar_prefetch=0,
            grid=grid,
            in_specs=[
                pl.BlockSpec((bt, input_dim), lambda i: (i, 0)),
                const2d(prepared["w1"]), const2d(prepared["b1"]),
                const2d(prepared["w2"]), const2d(prepared["b2"]),
                const2d(prepared["w3"]), const2d(prepared["b3"]),
                const2d(prepared["w4"]), const2d(prepared["b4"]),
            ],
            out_specs=pl.BlockSpec((bt, out_pad), lambda i: (i, 0)),
        ),
        compiler_params=pltpu.CompilerParams(
            dimension_semantics=("parallel",),
            vmem_limit_bytes=vmem_limit,
        ),
    )(xb, prepared["w1"], prepared["b1"], prepared["w2"], prepared["b2"],
      prepared["w3"], prepared["b3"], prepared["w4"], prepared["b4"])

    # NOTE: this slice is an extra HBM->HBM copy over ~out_pad/output_dim x
    # the useful bytes; callers that can consume the padded lane-dense slab
    # (and/or out_dtype=jnp.bfloat16) should do so for very large B.
    return out_padded[:B, :output_dim]


def reference_forward(x, params):
    """Plain-JAX f32 reference identical to the PyTorch forward."""
    h = jax.nn.leaky_relu(x @ params["w1"] + params["b1"], LEAKY_SLOPE)
    h = jax.nn.leaky_relu(h @ params["w2"] + params["b2"], LEAKY_SLOPE)
    h = jax.nn.leaky_relu(h @ params["w3"] + params["b3"], LEAKY_SLOPE)
    logits = h @ params["w4"] + params["b4"]
    return jax.nn.softmax(logits, axis=1)


def reference_forward_mixed(x, params, *, bf16_act):
    """Reference mirroring the kernel's precision: bf16 operands, f32 accum."""
    def dense(h, w, b):
        return jnp.dot(h.astype(jnp.bfloat16), w.astype(jnp.bfloat16),
                       preferred_element_type=jnp.float32) + b

    def act(h):
        if bf16_act:
            hb = h.astype(jnp.bfloat16)
            return jnp.maximum(hb, LEAKY_SLOPE * hb).astype(jnp.float32)
        return jnp.maximum(h, LEAKY_SLOPE * h)

    h = act(dense(x, params["w1"], params["b1"]))
    h = act(dense(h, params["w2"], params["b2"]))
    h = act(dense(h, params["w3"], params["b3"]))
    logits = dense(h, params["w4"], params["b4"])
    return jax.nn.softmax(logits, axis=1)


if __name__ == "__main__":
    key = jax.random.PRNGKey(0)
    k_params, k_x, k_x2 = jax.random.split(key, 3)

    batch = 8
    input_dim = 32
    output_dim = 8

    params = init_params(k_params, input_dim, output_dim)
    prepared = prepare_params(params)
    bf16_act = _vpu_supports_bf16()

    # --- small single-tile run (grid=(1,)) ---
    x = jax.random.normal(k_x, (batch, input_dim), jnp.float32)
    out = jax.block_until_ready(actor_forward(x, prepared))

    ref_mixed = reference_forward_mixed(x, params, bf16_act=bf16_act)
    ref_f32 = reference_forward(x, params)
    assert out.shape == (batch, output_dim)
    assert jnp.allclose(jnp.sum(out, axis=1), 1.0, atol=1e-5)  # exact divide
    assert jnp.allclose(out, ref_mixed, atol=5e-3, rtol=5e-3)
    assert jnp.allclose(out, ref_f32, atol=5e-2)  # loose: bf16 vs f32 weights

    # --- multi-tile run with a remainder (exercises padding + grid >= 2) ---
    batch2 = 200
    x2 = jax.random.normal(k_x2, (batch2, input_dim), jnp.float32)
    out2 = jax.block_until_ready(actor_forward(x2, prepared, batch_tile=128))
    ref2 = reference_forward_mixed(x2, params, bf16_act=bf16_act)
    assert out2.shape == (batch2, output_dim)
    assert jnp.allclose(jnp.sum(out2, axis=1), 1.0, atol=1e-5)
    assert jnp.allclose(out2, ref2, atol=5e-3, rtol=5e-3)

    print("KERNEL_OK")
</pallas_src>

<mosaic_0001>
module attributes {stable_mosaic.version = 11 : i64} {
  func.func @actor_kernel(%arg0: i32, %arg1: memref<16x32xbf16, #tpu.memory_space<vmem>>, %arg2: memref<32x1024xbf16, #tpu.memory_space<vmem>>, %arg3: memref<1x1024xf32, #tpu.memory_space<vmem>>, %arg4: memref<1024x512xbf16, #tpu.memory_space<vmem>>, %arg5: memref<1x512xf32, #tpu.memory_space<vmem>>, %arg6: memref<512x256xbf16, #tpu.memory_space<vmem>>, %arg7: memref<1x256xf32, #tpu.memory_space<vmem>>, %arg8: memref<256x128xbf16, #tpu.memory_space<vmem>>, %arg9: memref<1x128xf32, #tpu.memory_space<vmem>>, %arg10: memref<16x128xf32, #tpu.memory_space<vmem>>) attributes {dimension_semantics = [#tpu.dimension_semantics<parallel>], iteration_bounds = array<i64: 1>, scalar_prefetch = 0 : i64, scratch_operands = 0 : i64, tpu.core_type = #tpu.core_type<tc>, window_params = [{transform_indices = @transform_0, window_bounds = array<i64: 16, 32>}, {pipeline_mode = #tpu.pipeline_mode<synchronous>, transform_indices = @transform_1, window_bounds = array<i64: 32, 1024>}, {pipeline_mode = #tpu.pipeline_mode<synchronous>, transform_indices = @transform_2, window_bounds = array<i64: 1, 1024>}, {pipeline_mode = #tpu.pipeline_mode<synchronous>, transform_indices = @transform_3, window_bounds = array<i64: 1024, 512>}, {pipeline_mode = #tpu.pipeline_mode<synchronous>, transform_indices = @transform_4, window_bounds = array<i64: 1, 512>}, {pipeline_mode = #tpu.pipeline_mode<synchronous>, transform_indices = @transform_5, window_bounds = array<i64: 512, 256>}, {pipeline_mode = #tpu.pipeline_mode<synchronous>, transform_indices = @transform_6, window_bounds = array<i64: 1, 256>}, {pipeline_mode = #tpu.pipeline_mode<synchronous>, transform_indices = @transform_7, window_bounds = array<i64: 256, 128>}, {pipeline_mode = #tpu.pipeline_mode<synchronous>, transform_indices = @transform_8, window_bounds = array<i64: 1, 128>}, {transform_indices = @transform_9, window_bounds = array<i64: 16, 128>}]} {
    %c0 = arith.constant 0 : index
    %c0_0 = arith.constant 0 : index
    %0 = vector.load %arg1[%c0, %c0_0] : memref<16x32xbf16, #tpu.memory_space<vmem>>, vector<16x32xbf16>
    %c0_1 = arith.constant 0 : index
    %c0_2 = arith.constant 0 : index
    %1 = vector.load %arg2[%c0_1, %c0_2] : memref<32x1024xbf16, #tpu.memory_space<vmem>>, vector<32x1024xbf16>
    %cst = arith.constant dense<0.000000e+00> : vector<16x1024xf32>
    %2 = tpu.matmul %0, %1, %cst {dimension_numbers = #tpu.dot_dimension_numbers<[1], [0], [0], [1], [0, 0, 1, 1], [], []>} : vector<16x32xbf16>, vector<32x1024xbf16>, vector<16x1024xf32> -> vector<16x1024xf32>
    %c0_3 = arith.constant 0 : index
    %c0_4 = arith.constant 0 : index
    %3 = vector.load %arg3[%c0_3, %c0_4] : memref<1x1024xf32, #tpu.memory_space<vmem>>, vector<1x1024xf32>
    %4 = vector.broadcast %3 : vector<1x1024xf32> to vector<16x1024xf32>
    %5 = arith.addf %2, %4 : vector<16x1024xf32>
    %6 = arith.truncf %5 : vector<16x1024xf32> to vector<16x1024xbf16>
    %cst_5 = arith.constant 1.000980e-02 : bf16
    %7 = vector.broadcast %cst_5 : bf16 to vector<16x1024xbf16>
    %8 = arith.mulf %7, %6 : vector<16x1024xbf16>
    %9 = arith.maximumf %6, %8 : vector<16x1024xbf16>
    %c0_6 = arith.constant 0 : index
    %c0_7 = arith.constant 0 : index
    %10 = vector.load %arg4[%c0_6, %c0_7] : memref<1024x512xbf16, #tpu.memory_space<vmem>>, vector<1024x512xbf16>
    %cst_8 = arith.constant dense<0.000000e+00> : vector<16x512xf32>
    %11 = tpu.matmul %9, %10, %cst_8 {dimension_numbers = #tpu.dot_dimension_numbers<[1], [0], [0], [1], [0, 0, 1, 1], [], []>} : vector<16x1024xbf16>, vector<1024x512xbf16>, vector<16x512xf32> -> vector<16x512xf32>
    %c0_9 = arith.constant 0 : index
    %c0_10 = arith.constant 0 : index
    %12 = vector.load %arg5[%c0_9, %c0_10] : memref<1x512xf32, #tpu.memory_space<vmem>>, vector<1x512xf32>
    %13 = vector.broadcast %12 : vector<1x512xf32> to vector<16x512xf32>
    %14 = arith.addf %11, %13 : vector<16x512xf32>
    %15 = arith.truncf %14 : vector<16x512xf32> to vector<16x512xbf16>
    %cst_11 = arith.constant 1.000980e-02 : bf16
    %16 = vector.broadcast %cst_11 : bf16 to vector<16x512xbf16>
    %17 = arith.mulf %16, %15 : vector<16x512xbf16>
    %18 = arith.maximumf %15, %17 : vector<16x512xbf16>
    %c0_12 = arith.constant 0 : index
    %c0_13 = arith.constant 0 : index
    %19 = vector.load %arg6[%c0_12, %c0_13] : memref<512x256xbf16, #tpu.memory_space<vmem>>, vector<512x256xbf16>
    %cst_14 = arith.constant dense<0.000000e+00> : vector<16x256xf32>
    %20 = tpu.matmul %18, %19, %cst_14 {dimension_numbers = #tpu.dot_dimension_numbers<[1], [0], [0], [1], [0, 0, 1, 1], [], []>} : vector<16x512xbf16>, vector<512x256xbf16>, vector<16x256xf32> -> vector<16x256xf32>
    %c0_15 = arith.constant 0 : index
    %c0_16 = arith.constant 0 : index
    %21 = vector.load %arg7[%c0_15, %c0_16] : memref<1x256xf32, #tpu.memory_space<vmem>>, vector<1x256xf32>
    %22 = vector.broadcast %21 : vector<1x256xf32> to vector<16x256xf32>
    %23 = arith.addf %20, %22 : vector<16x256xf32>
    %24 = arith.truncf %23 : vector<16x256xf32> to vector<16x256xbf16>
    %cst_17 = arith.constant 1.000980e-02 : bf16
    %25 = vector.broadcast %cst_17 : bf16 to vector<16x256xbf16>
    %26 = arith.mulf %25, %24 : vector<16x256xbf16>
    %27 = arith.maximumf %24, %26 : vector<16x256xbf16>
    %c0_18 = arith.constant 0 : index
    %c0_19 = arith.constant 0 : index
    %28 = vector.load %arg8[%c0_18, %c0_19] : memref<256x128xbf16, #tpu.memory_space<vmem>>, vector<256x128xbf16>
    %cst_20 = arith.constant dense<0.000000e+00> : vector<16x128xf32>
    %29 = tpu.matmul %27, %28, %cst_20 {dimension_numbers = #tpu.dot_dimension_numbers<[1], [0], [0], [1], [0, 0, 1, 1], [], []>} : vector<16x256xbf16>, vector<256x128xbf16>, vector<16x128xf32> -> vector<16x128xf32>
    %c0_21 = arith.constant 0 : index
    %c0_22 = arith.constant 0 : index
    %30 = vector.load %arg9[%c0_21, %c0_22] : memref<1x128xf32, #tpu.memory_space<vmem>>, vector<1x128xf32>
    %31 = vector.broadcast %30 : vector<1x128xf32> to vector<16x128xf32>
    %32 = arith.addf %29, %31 : vector<16x128xf32>
    %cst_23 = arith.constant dense<0xFF800000> : vector<16xf32>
    %33 = vector.multi_reduction <maximumf>, %32, %cst_23 [1] : vector<16x128xf32> to vector<16xf32>
    %34 = vector.shape_cast %33 : vector<16xf32> to vector<16x1xf32>
    %35 = vector.broadcast %34 : vector<16x1xf32> to vector<16x128xf32>
    %36 = arith.subf %32, %35 : vector<16x128xf32>
    %37 = math.exp %36 : vector<16x128xf32>
    %cst_24 = arith.constant dense<0.000000e+00> : vector<16xf32>
    %38 = vector.multi_reduction <add>, %37, %cst_24 [1] : vector<16x128xf32> to vector<16xf32>
    %39 = vector.shape_cast %38 : vector<16xf32> to vector<16x1xf32>
    %40 = vector.broadcast %39 : vector<16x1xf32> to vector<16x128xf32>
    %41 = arith.divf %37, %40 : vector<16x128xf32>
    %c0_25 = arith.constant 0 : index
    %c0_26 = arith.constant 0 : index
    %42 = vector.load %arg10[%c0_25, %c0_26] : memref<16x128xf32, #tpu.memory_space<vmem>>, vector<16x128xf32>
    tpu.vector_store %arg10[%c0_25, %c0_26], %41 {strides = array<i32>} : memref<16x128xf32, #tpu.memory_space<vmem>>, vector<16x128xf32>,
    return
  }
  func.func @transform_0(%arg0: i32) -> (i32, i32) {
    %c0_i32 = arith.constant 0 : i32
    %c0_i32_0 = arith.constant 0 : i32
    return %arg0, %c0_i32 : i32, i32
  }
  func.func @transform_1(%arg0: i32) -> (i32, i32) {
    %c0_i32 = arith.constant 0 : i32
    %c0_i32_0 = arith.constant 0 : i32
    %c0_i32_1 = arith.constant 0 : i32
    return %c0_i32, %c0_i32_0 : i32, i32
  }
  func.func @transform_2(%arg0: i32) -> (i32, i32) {
    %c0_i32 = arith.constant 0 : i32
    %c0_i32_0 = arith.constant 0 : i32
    %c0_i32_1 = arith.constant 0 : i32
    return %c0_i32, %c0_i32_0 : i32, i32
  }
  func.func @transform_3(%arg0: i32) -> (i32, i32) {
    %c0_i32 = arith.constant 0 : i32
    %c0_i32_0 = arith.constant 0 : i32
    %c0_i32_1 = arith.constant 0 : i32
    return %c0_i32, %c0_i32_0 : i32, i32
  }
  func.func @transform_4(%arg0: i32) -> (i32, i32) {
    %c0_i32 = arith.constant 0 : i32
    %c0_i32_0 = arith.constant 0 : i32
    %c0_i32_1 = arith.constant 0 : i32
    return %c0_i32, %c0_i32_0 : i32, i32
  }
  func.func @transform_5(%arg0: i32) -> (i32, i32) {
    %c0_i32 = arith.constant 0 : i32
    %c0_i32_0 = arith.constant 0 : i32
    %c0_i32_1 = arith.constant 0 : i32
    return %c0_i32, %c0_i32_0 : i32, i32
  }
  func.func @transform_6(%arg0: i32) -> (i32, i32) {
    %c0_i32 = arith.constant 0 : i32
    %c0_i32_0 = arith.constant 0 : i32
    %c0_i32_1 = arith.constant 0 : i32
    return %c0_i32, %c0_i32_0 : i32, i32
  }
  func.func @transform_7(%arg0: i32) -> (i32, i32) {
    %c0_i32 = arith.constant 0 : i32
    %c0_i32_0 = arith.constant 0 : i32
    %c0_i32_1 = arith.constant 0 : i32
    return %c0_i32, %c0_i32_0 : i32, i32
  }
  func.func @transform_8(%arg0: i32) -> (i32, i32) {
    %c0_i32 = arith.constant 0 : i32
    %c0_i32_0 = arith.constant 0 : i32
    %c0_i32_1 = arith.constant 0 : i32
    return %c0_i32, %c0_i32_0 : i32, i32
  }
  func.func @transform_9(%arg0: i32) -> (i32, i32) {
    %c0_i32 = arith.constant 0 : i32
    %c0_i32_0 = arith.constant 0 : i32
    return %arg0, %c0_i32 : i32, i32
  }
}

</mosaic_0001>

<llo_original>
// kernel: tpu_custom_call.1
$region0: #{tpu_custom_call.1}
  #allocation0 [shape = 'u32[]', space=smem, size = 0x4, offset = 0x4, fixed_abs, tag = 'smem constant byte address 0x4 - core index']
  #allocation1 [shape = 'u32[144,128]{1,0:T(1,128)}', space=vmem, size = 0x12000, scoped, tag = 'internal scratch']
  %s0 = inlined_call_operand.hbm [shape: bf16[16,32], index: 0, kind: input, shape index: {}]
  %s1 = inlined_call_operand.hbm [shape: bf16[32,1024], index: 1, kind: input, shape index: {}]
  %s2 = inlined_call_operand.hbm [shape: f32[1,1024], index: 2, kind: input, shape index: {}]
  %s3 = inlined_call_operand.hbm [shape: bf16[1024,512], index: 3, kind: input, shape index: {}]
  %s4 = inlined_call_operand.vmem [shape: f32[1,512], index: 4, kind: input, shape index: {}]
  %s5 = inlined_call_operand.hbm [shape: bf16[512,256], index: 5, kind: input, shape index: {}]
  %s6 = inlined_call_operand.vmem [shape: f32[1,256], index: 6, kind: input, shape index: {}]
  %s7 = inlined_call_operand.hbm [shape: bf16[256,128], index: 7, kind: input, shape index: {}]
  %s8 = inlined_call_operand.vmem [shape: f32[1,128], index: 8, kind: input, shape index: {}]
  %s9 = inlined_call_operand.hbm [shape: f32[16,128], index: 9, kind: output, shape index: {}]
  %s10 = sld [smem:[#allocation0]]
  $region70: #{tpu_custom_call.1} parent=0
    _
  %s12 = ssub.s32 1, %s10
  %s13 = scalar_select 0, %s12, %s10
  $region1: #{tpu_custom_call.1} parent=0
    #allocation2 [shape = 'u8[4096]{0}', space=vmem, size = 0x1000, scoped, tag = 'input window, operand 0, single buffered']
    #allocation3 [shape = 's32[1]{0}', space=sflag, size = 0x4, scoped, tag = 'scoped memory for tpu_custom_call.1']
    #allocation4 [shape = 's32[1]{0}', space=sflag, size = 0x4, scoped, tag = 'scoped memory for tpu_custom_call.1']
    #allocation5 [shape = 'u8[65536]{0}', space=vmem, size = 0x10000, scoped, tag = 'input window, operand 1, single buffered']
    #allocation6 [shape = 's32[1]{0}', space=sflag, size = 0x4, scoped, tag = 'scoped memory for tpu_custom_call.1']
    #allocation7 [shape = 'u8[4096]{0}', space=vmem, size = 0x1000, scoped, tag = 'input window, operand 2, single buffered']
    #allocation8 [shape = 'u8[1048576]{0}', space=vmem, size = 0x100000, scoped, tag = 'input window, operand 3, single buffered']
    #allocation9 [shape = 's32[1]{0}', space=sflag, size = 0x4, scoped, tag = 'scoped memory for tpu_custom_call.1']
    #allocation10 [shape = 'u8[262144]{0}', space=vmem, size = 0x40000, scoped, tag = 'input window, operand 5, single buffered']
    #allocation11 [shape = 'u8[65536]{0}', space=vmem, size = 0x10000, scoped, tag = 'input window, operand 7, single buffered']
    #allocation12 [shape = 's32[1]{0}', space=sflag, size = 0x4, scoped, tag = 'scoped memory for tpu_custom_call.1']
    #allocation13 [shape = 'u8[8192]{0}', space=vmem, size = 0x2000, scoped, tag = 'output window, operand 0, single buffered']
    %14 = vsyncpa [#allocation3], 0
    %15 = vsyncpa [#allocation6], 0
    %16 = vsyncpa [#allocation9], 0
    %17 = vsyncpa [#allocation12], 0
    %18 = vsyncpa [#allocation4], 0
    // Predicated region
    $region2: #{tpu_custom_call.1} parent=1 // pred_check
      _
    $region3: #{tpu_custom_call.1} parent=1 // pred_check_branch
      %20 = sbr.rel (0) target = $region5
    $region4: #{tpu_custom_call.1} parent=1 // pred_region
      %s22 = ssub.s32 128, 128
      %23 = vsyncadd [#allocation3], %s22
      %s24 = sshll.u32 [#allocation2], 4
      %s25 = int_to_ptr.vmem [resolvable:$true] %s24
      %30 = dma.hbm_to_vmem [thread:$0]  %s0, 128, %s25, [#allocation3], 64, 64, 4
    $region5: #{tpu_custom_call.1} parent=1 // pred_fallthru
      _
    // Predicated region
    $region6: #{tpu_custom_call.1} parent=1 // pred_check
      _
    $region7: #{tpu_custom_call.1} parent=1 // pred_check_branch
      %32 = sbr.rel (0) target = $region9
    $region8: #{tpu_custom_call.1} parent=1 // pred_region
      %s34 = ssub.s32 2048, 2048
      %35 = vsyncadd [#allocation6], %s34
      %s36 = sshll.u32 [#allocation5], 4
      %s37 = int_to_ptr.vmem [resolvable:$true] %s36
      %42 = dma.hbm_to_vmem [thread:$0]  %s1, 2048, %s37, [#allocation6], 512, 512, 32
    $region9: #{tpu_custom_call.1} parent=1 // pred_fallthru
      _
    // Predicated region
    $region10: #{tpu_custom_call.1} parent=1 // pred_check
      _
    $region11: #{tpu_custom_call.1} parent=1 // pred_check_branch
      %44 = sbr.rel (0) target = $region13
    $region12: #{tpu_custom_call.1} parent=1 // pred_region
      %s46 = ssub.s32 128, 128
      %47 = vsyncadd [#allocation6], %s46
      %s49 = sshll.u32 [#allocation7], 4
      %s50 = int_to_ptr.vmem [resolvable:$true] %s49
      %52 = dma.hbm_to_vmem [thread:$0]  %s2, 128, %s50, [#allocation6]
    $region13: #{tpu_custom_call.1} parent=1 // pred_fallthru
      _
    // Predicated region
    $region14: #{tpu_custom_call.1} parent=1 // pred_check
      _
    $region15: #{tpu_custom_call.1} parent=1 // pred_check_branch
      %54 = sbr.rel (0) target = $region17
    $region16: #{tpu_custom_call.1} parent=1 // pred_region
      %s56 = ssub.s32 32768, 32768
      %57 = vsyncadd [#allocation9], %s56
      %s58 = sshll.u32 [#allocation8], 4
      %s59 = int_to_ptr.vmem [resolvable:$true] %s58
      %64 = dma.hbm_to_vmem [thread:$0]  %s3, 32768, %s59, [#allocation9], 256, 256, 16
    $region17: #{tpu_custom_call.1} parent=1 // pred_fallthru
      _
    // Predicated region
    $region18: #{tpu_custom_call.1} parent=1 // pred_check
      _
    $region19: #{tpu_custom_call.1} parent=1 // pred_check_branch
      %66 = sbr.rel (0) target = $region21
    $region20: #{tpu_custom_call.1} parent=1 // pred_region
      _
    $region21: #{tpu_custom_call.1} parent=1 // pred_fallthru
      _
    // Predicated region
    $region22: #{tpu_custom_call.1} parent=1 // pred_check
      _
    $region23: #{tpu_custom_call.1} parent=1 // pred_check_branch
      %68 = sbr.rel (0) target = $region25
    $region24: #{tpu_custom_call.1} parent=1 // pred_region
      %s70 = ssub.s32 8192, 8192
      %71 = vsyncadd [#allocation9], %s70
      %s72 = sshll.u32 [#allocation10], 4
      %s73 = int_to_ptr.vmem [resolvable:$true] %s72
      %78 = dma.hbm_to_vmem [thread:$0]  %s5, 8192, %s73, [#allocation9], 128, 128, 8
    $region25: #{tpu_custom_call.1} parent=1 // pred_fallthru
      _
    // Predicated region
    $region26: #{tpu_custom_call.1} parent=1 // pred_check
      _
    $region27: #{tpu_custom_call.1} parent=1 // pred_check_branch
      %80 = sbr.rel (0) target = $region29
    $region28: #{tpu_custom_call.1} parent=1 // pred_region
      _
    $region29: #{tpu_custom_call.1} parent=1 // pred_fallthru
      _
    // Predicated region
    $region30: #{tpu_custom_call.1} parent=1 // pred_check
      _
    $region31: #{tpu_custom_call.1} parent=1 // pred_check_branch
      %82 = sbr.rel (0) target = $region33
    $region32: #{tpu_custom_call.1} parent=1 // pred_region
      %s84 = ssub.s32 2048, 2048
      %85 = vsyncadd [#allocation12], %s84
      %s86 = sshll.u32 [#allocation11], 4
      %s87 = int_to_ptr.vmem [resolvable:$true] %s86
      %92 = dma.hbm_to_vmem [thread:$0]  %s7, 2048, %s87, [#allocation12], 64, 64, 4
    $region33: #{tpu_custom_call.1} parent=1 // pred_fallthru
      _
    // Predicated region
    $region34: #{tpu_custom_call.1} parent=1 // pred_check
      _
    $region35: #{tpu_custom_call.1} parent=1 // pred_check_branch
      %94 = sbr.rel (0) target = $region37
    $region36: #{tpu_custom_call.1} parent=1 // pred_region
      _
    $region37: #{tpu_custom_call.1} parent=1 // pred_fallthru
      _
    // Predicated region
    $region38: #{tpu_custom_call.1} parent=1 // pred_check
      _
    $region39: #{tpu_custom_call.1} parent=1 // pred_check_branch
      %96 = sbr.rel (0) target = $region41
    $region40: #{tpu_custom_call.1} parent=1 // pred_region
      %97 = dma.done [#allocation3], 128
    $region41: #{tpu_custom_call.1} parent=1 // pred_fallthru
      _
    // Predicated region
    $region42: #{tpu_custom_call.1} parent=1 // pred_check
      _
    $region43: #{tpu_custom_call.1} parent=1 // pred_check_branch
      %99 = sbr.rel (0) target = $region45
    $region44: #{tpu_custom_call.1} parent=1 // pred_region
      %100 = dma.done [#allocation6], 2048
    $region45: #{tpu_custom_call.1} parent=1 // pred_fallthru
      _
    // Predicated region
    $region46: #{tpu_custom_call.1} parent=1 // pred_check
      _
    $region47: #{tpu_custom_call.1} parent=1 // pred_check_branch
      %102 = sbr.rel (0) target = $region49
    $region48: #{tpu_custom_call.1} parent=1 // pred_region
      %103 = dma.done [#allocation6], 128
    $region49: #{tpu_custom_call.1} parent=1 // pred_fallthru
      _
    // Predicated region
    $region50: #{tpu_custom_call.1} parent=1 // pred_check
      _
    $region51: #{tpu_custom_call.1} parent=1 // pred_check_branch
      %105 = sbr.rel (0) target = $region53
    $region52: #{tpu_custom_call.1} parent=1 // pred_region
      %106 = dma.done [#allocation9], 32768
    $region53: #{tpu_custom_call.1} parent=1 // pred_fallthru
      _
    // Predicated region
    $region54: #{tpu_custom_call.1} parent=1 // pred_check
      _
    $region55: #{tpu_custom_call.1} parent=1 // pred_check_branch
      %108 = sbr.rel (0) target = $region57
    $region56: #{tpu_custom_call.1} parent=1 // pred_region
      %109 = dma.done [#allocation9], 8192
    $region57: #{tpu_custom_call.1} parent=1 // pred_fallthru
      _
    // Predicated region
    $region58: #{tpu_custom_call.1} parent=1 // pred_check
      _
    $region59: #{tpu_custom_call.1} parent=1 // pred_check_branch
      %111 = sbr.rel (0) target = $region61
    $region60: #{tpu_custom_call.1} parent=1 // pred_region
      %112 = dma.done [#allocation12], 2048
    $region61: #{tpu_custom_call.1} parent=1 // pred_fallthru
      _
    %v115 = vld [vmem:[#allocation2] sm:$0xf]
    %v116 = vld [vmem:[#allocation2 + $0x4] sm:$0xf]
    %v117 = vld [vmem:[#allocation5] sm:$0xff]
    %v118 = vld [vmem:[#allocation5 + $0x8] sm:$0xff]
    %v119 = vld [vmem:[#allocation5 + $0x10] sm:$0xff]
    %v120 = vld [vmem:[#allocation5 + $0x18] sm:$0xff]
    %v121 = vld [vmem:[#allocation5 + $0x20] sm:$0xff]
    %v122 = vld [vmem:[#allocation5 + $0x28] sm:$0xff]
    %v123 = vld [vmem:[#allocation5 + $0x30] sm:$0xff]
    %v124 = vld [vmem:[#allocation5 + $0x38] sm:$0xff]
    %v125 = vld [vmem:[#allocation5 + $0x40] sm:$0xff]
    %v126 = vld [vmem:[#allocation5 + $0x48] sm:$0xff]
    %v127 = vld [vmem:[#allocation5 + $0x50] sm:$0xff]
    %v128 = vld [vmem:[#allocation5 + $0x58] sm:$0xff]
    %v129 = vld [vmem:[#allocation5 + $0x60] sm:$0xff]
    %v130 = vld [vmem:[#allocation5 + $0x68] sm:$0xff]
    %v131 = vld [vmem:[#allocation5 + $0x70] sm:$0xff]
    %v132 = vld [vmem:[#allocation5 + $0x78] sm:$0xff]
    %v133 = vld [vmem:[#allocation7] sm:$0xff]
    %v135 = vlaneseq
    %v136 = vshrl.u32 %v135, 7
    %v137 = vsub.s32 0, %v136
    %v138 = vrot.slane %v133, %v137
    %v139 = vlaneseq
    %v140 = vshrl.u32 %v139, 7
    %v141 = vsub.s32 1, %v140
    %v142 = vrot.slane %v133, %v141
    %v143 = vlaneseq
    %v144 = vshrl.u32 %v143, 7
    %v145 = vsub.s32 2, %v144
    %v146 = vrot.slane %v133, %v145
    %v147 = vlaneseq
    %v148 = vshrl.u32 %v147, 7
    %v149 = vsub.s32 3, %v148
    %v150 = vrot.slane %v133, %v149
    %v151 = vlaneseq
    %v152 = vshrl.u32 %v151, 7
    %v153 = vsub.s32 4, %v152
    %v154 = vrot.slane %v133, %v153
    %v155 = vlaneseq
    %v156 = vshrl.u32 %v155, 7
    %v157 = vsub.s32 5, %v156
    %v158 = vrot.slane %v133, %v157
    %v159 = vlaneseq
    %v160 = vshrl.u32 %v159, 7
    %v161 = vsub.s32 6, %v160
    %v162 = vrot.slane %v133, %v161
    %v163 = vlaneseq
    %v164 = vshrl.u32 %v163, 7
    %v165 = vsub.s32 7, %v164
    %v166 = vrot.slane %v133, %v165
    %v177 = vunpack.c.l.b16 %v115
    %v178 = vunpack.c.l.b16 %v116
    %v179 = vpack.c.b16 %v178, %v177
    %v196 = vunpack.c.l.b16 %v117
    %v197 = vunpack.c.h.b16 %v117
    %v198 = vunpack.c.l.b16 %v118
    %v199 = vunpack.c.h.b16 %v118
    %v200 = vunpack.c.l.b16 %v119
    %v201 = vunpack.c.h.b16 %v119
    %v202 = vunpack.c.l.b16 %v120
    %v203 = vunpack.c.h.b16 %v120
    %v204 = vunpack.c.l.b16 %v121
    %v205 = vunpack.c.h.b16 %v121
    %v206 = vunpack.c.l.b16 %v122
    %v207 = vunpack.c.h.b16 %v122
    %v208 = vunpack.c.l.b16 %v123
    %v209 = vunpack.c.h.b16 %v123
    %v210 = vunpack.c.l.b16 %v124
    %v211 = vunpack.c.h.b16 %v124
    %v212 = vunpack.c.l.b16 %v125
    %v213 = vunpack.c.h.b16 %v125
    %v214 = vunpack.c.l.b16 %v126
    %v215 = vunpack.c.h.b16 %v126
    %v216 = vunpack.c.l.b16 %v127
    %v217 = vunpack.c.h.b16 %v127
    %v218 = vunpack.c.l.b16 %v128
    %v219 = vunpack.c.h.b16 %v128
    %v220 = vunpack.c.l.b16 %v129
    %v221 = vunpack.c.h.b16 %v129
    %v222 = vunpack.c.l.b16 %v130
    %v223 = vunpack.c.h.b16 %v130
    %v224 = vunpack.c.l.b16 %v131
    %v225 = vunpack.c.h.b16 %v131
    %v226 = vunpack.c.l.b16 %v132
    %v227 = vunpack.c.h.b16 %v132
    %v228 = vpack.c.b16 %v204, %v196
    %v229 = vpack.c.b16 %v205, %v197
    %v230 = vpack.c.b16 %v206, %v198
    %v231 = vpack.c.b16 %v207, %v199
    %v232 = vpack.c.b16 %v208, %v200
    %v233 = vpack.c.b16 %v209, %v201
    %v234 = vpack.c.b16 %v210, %v202
    %v235 = vpack.c.b16 %v211, %v203
    %v236 = vpack.c.b16 %v220, %v212
    %v237 = vpack.c.b16 %v221, %v213
    %v238 = vpack.c.b16 %v222, %v214
    %v239 = vpack.c.b16 %v223, %v215
    %v240 = vpack.c.b16 %v224, %v216
    %v241 = vpack.c.b16 %v225, %v217
    %v242 = vpack.c.b16 %v226, %v218
    %v243 = vpack.c.b16 %v227, %v219
    %vm260 = vcmask 261120
    %v262 = vsel %vm260, %v179, 0
    %264 = vmatprep.subr.bf16.mxu0 0
    %265 = vmatpush1.bf16.msra.mxu0 0
    %266 = vmatprep.subr.bf16.mxu0 0
    %267 = vmatpush1.bf16.msra.mxu0 0
    %268 = vmatprep.subr.bf16.mxu0 0
    %269 = vmatpush1.bf16.msra.mxu0 0
    %270 = vmatprep.subr.bf16.mxu0 0
    %271 = vmatpush1.bf16.msra.mxu0 0
    %272 = vmatprep.subr.bf16.mxu0 0
    %273 = vmatpush1.bf16.msra.mxu0 0
    %274 = vmatprep.subr.bf16.mxu0 0
    %275 = vmatpush1.bf16.msra.mxu0 0
    %276 = vmatprep.subr.bf16.mxu0 %v237
    %277 = vmatpush1.bf16.msra.mxu0 %v236
    %278 = vmatprep.subr.bf16.mxu0 %v229
    %279 = vmatpush1.bf16.msra.mxu0 %v228
    %280 = vmatprep.subr.bf16.mxu0 0
    %281 = vmatpush2.bf16.msra.mxu0 0
    %282 = vmatprep.subr.bf16.mxu0 0
    %283 = vmatpush2.bf16.msra.mxu0 0
    %284 = vmatprep.subr.bf16.mxu0 0
    %285 = vmatpush2.bf16.msra.mxu0 0
    %286 = vmatprep.subr.bf16.mxu0 0
    %287 = vmatpush2.bf16.msra.mxu0 0
    %288 = vmatprep.subr.bf16.mxu0 0
    %289 = vmatpush2.bf16.msra.mxu0 0
    %290 = vmatprep.subr.bf16.mxu0 0
    %291 = vmatpush2.bf16.msra.mxu0 0
    %292 = vmatprep.subr.bf16.mxu0 0
    %293 = vmatpush2.bf16.msra.mxu0 0
    %294 = vmatprep.subr.bf16.mxu0 0
    %295 = vmatpush2.bf16.msra.mxu0 0
    %296 = vmatprep.mubr.bf16.mxu0 0
    %297 = vmatmul.mubr.bf16.gmra.mxu0 %v262
    %v298 = vpop.f32.mrf.mxu0
    %v299 = vadd.f32 %v138, %v298
    %v300 = vpop.f32.mrf.mxu0
    %v301 = vadd.f32 %v142, %v300
    %v302 = vpop.f32.mrf.mxu0
    %v303 = vadd.f32 %v138, %v302
    %v304 = vpop.f32.mrf.mxu0
    %v305 = vadd.f32 %v142, %v304
    %306 = vdwg.mxu0
    %307 = vmatprep.subr.bf16.mxu0 0
    %308 = vmatpush1.bf16.msra.mxu0 0
    %309 = vmatprep.subr.bf16.mxu0 0
    %310 = vmatpush1.bf16.msra.mxu0 0
    %311 = vmatprep.subr.bf16.mxu0 0
    %312 = vmatpush1.bf16.msra.mxu0 0
    %313 = vmatprep.subr.bf16.mxu0 0
    %314 = vmatpush1.bf16.msra.mxu0 0
    %315 = vmatprep.subr.bf16.mxu0 0
    %316 = vmatpush1.bf16.msra.mxu0 0
    %317 = vmatprep.subr.bf16.mxu0 0
    %318 = vmatpush1.bf16.msra.mxu0 0
    %319 = vmatprep.subr.bf16.mxu0 %v239
    %320 = vmatpush1.bf16.msra.mxu0 %v238
    %321 = vmatprep.subr.bf16.mxu0 %v231
    %322 = vmatpush1.bf16.msra.mxu0 %v230
    %323 = vmatprep.subr.bf16.mxu0 0
    %324 = vmatpush2.bf16.msra.mxu0 0
    %325 = vmatprep.subr.bf16.mxu0 0
    %326 = vmatpush2.bf16.msra.mxu0 0
    %327 = vmatprep.subr.bf16.mxu0 0
    %328 = vmatpush2.bf16.msra.mxu0 0
    %329 = vmatprep.subr.bf16.mxu0 0
    %330 = vmatpush2.bf16.msra.mxu0 0
    %331 = vmatprep.subr.bf16.mxu0 0
    %332 = vmatpush2.bf16.msra.mxu0 0
    %333 = vmatprep.subr.bf16.mxu0 0
    %334 = vmatpush2.bf16.msra.mxu0 0
    %335 = vmatprep.subr.bf16.mxu0 0
    %336 = vmatpush2.bf16.msra.mxu0 0
    %337 = vmatprep.subr.bf16.mxu0 0
    %338 = vmatpush2.bf16.msra.mxu0 0
    %339 = vmatprep.mubr.bf16.mxu0 0
    %340 = vmatmul.mubr.bf16.gmra.mxu0 %v262
    %v341 = vpop.f32.mrf.mxu0
    %v342 = vadd.f32 %v146, %v341
    %v343 = vpop.f32.mrf.mxu0
    %v344 = vadd.f32 %v150, %v343
    %v345 = vpop.f32.mrf.mxu0
    %v346 = vadd.f32 %v146, %v345
    %v347 = vpop.f32.mrf.mxu0
    %v348 = vadd.f32 %v150, %v347
    %349 = vdwg.mxu0
    %350 = vmatprep.subr.bf16.mxu0 0
    %351 = vmatpush1.bf16.msra.mxu0 0
    %352 = vmatprep.subr.bf16.mxu0 0
    %353 = vmatpush1.bf16.msra.mxu0 0
    %354 = vmatprep.subr.bf16.mxu0 0
    %355 = vmatpush1.bf16.msra.mxu0 0
    %356 = vmatprep.subr.bf16.mxu0 0
    %357 = vmatpush1.bf16.msra.mxu0 0
    %358 = vmatprep.subr.bf16.mxu0 0
    %359 = vmatpush1.bf16.msra.mxu0 0
    %360 = vmatprep.subr.bf16.mxu0 0
    %361 = vmatpush1.bf16.msra.mxu0 0
    %362 = vmatprep.subr.bf16.mxu0 %v241
    %363 = vmatpush1.bf16.msra.mxu0 %v240
    %364 = vmatprep.subr.bf16.mxu0 %v233
    %365 = vmatpush1.bf16.msra.mxu0 %v232
    %366 = vmatprep.subr.bf16.mxu0 0
    %367 = vmatpush2.bf16.msra.mxu0 0
    %368 = vmatprep.subr.bf16.mxu0 0
    %369 = vmatpush2.bf16.msra.mxu0 0
    %370 = vmatprep.subr.bf16.mxu0 0
    %371 = vmatpush2.bf16.msra.mxu0 0
    %372 = vmatprep.subr.bf16.mxu0 0
    %373 = vmatpush2.bf16.msra.mxu0 0
    %374 = vmatprep.subr.bf16.mxu0 0
    %375 = vmatpush2.bf16.msra.mxu0 0
    %376 = vmatprep.subr.bf16.mxu0 0
    %377 = vmatpush2.bf16.msra.mxu0 0
    %378 = vmatprep.subr.bf16.mxu0 0
    %379 = vmatpush2.bf16.msra.mxu0 0
    %380 = vmatprep.subr.bf16.mxu0 0
    %381 = vmatpush2.bf16.msra.mxu0 0
    %382 = vmatprep.mubr.bf16.mxu0 0
    %383 = vmatmul.mubr.bf16.gmra.mxu0 %v262
    %v384 = vpop.f32.mrf.mxu0
    %v385 = vadd.f32 %v154, %v384
    %v386 = vpop.f32.mrf.mxu0
    %v387 = vadd.f32 %v158, %v386
    %v388 = vpop.f32.mrf.mxu0
    %v389 = vadd.f32 %v154, %v388
    %v390 = vpop.f32.mrf.mxu0
    %v391 = vadd.f32 %v158, %v390
    %392 = vdwg.mxu0
    %393 = vmatprep.subr.bf16.mxu0 0
    %394 = vmatpush1.bf16.msra.mxu0 0
    %395 = vmatprep.subr.bf16.mxu0 0
    %396 = vmatpush1.bf16.msra.mxu0 0
    %397 = vmatprep.subr.bf16.mxu0 0
    %398 = vmatpush1.bf16.msra.mxu0 0
    %399 = vmatprep.subr.bf16.mxu0 0
    %400 = vmatpush1.bf16.msra.mxu0 0
    %401 = vmatprep.subr.bf16.mxu0 0
    %402 = vmatpush1.bf16.msra.mxu0 0
    %403 = vmatprep.subr.bf16.mxu0 0
    %404 = vmatpush1.bf16.msra.mxu0 0
    %405 = vmatprep.subr.bf16.mxu0 %v243
    %406 = vmatpush1.bf16.msra.mxu0 %v242
    %407 = vmatprep.subr.bf16.mxu0 %v235
    %408 = vmatpush1.bf16.msra.mxu0 %v234
    %409 = vmatprep.subr.bf16.mxu0 0
    %410 = vmatpush2.bf16.msra.mxu0 0
    %411 = vmatprep.subr.bf16.mxu0 0
    %412 = vmatpush2.bf16.msra.mxu0 0
    %413 = vmatprep.subr.bf16.mxu0 0
    %414 = vmatpush2.bf16.msra.mxu0 0
    %415 = vmatprep.subr.bf16.mxu0 0
    %416 = vmatpush2.bf16.msra.mxu0 0
    %417 = vmatprep.subr.bf16.mxu0 0
    %418 = vmatpush2.bf16.msra.mxu0 0
    %419 = vmatprep.subr.bf16.mxu0 0
    %420 = vmatpush2.bf16.msra.mxu0 0
    %421 = vmatprep.subr.bf16.mxu0 0
    %422 = vmatpush2.bf16.msra.mxu0 0
    %423 = vmatprep.subr.bf16.mxu0 0
    %424 = vmatpush2.bf16.msra.mxu0 0
    %425 = vmatprep.mubr.bf16.mxu0 0
    %426 = vmatmul.mubr.bf16.gmra.mxu0 %v262
    %v427 = vpop.f32.mrf.mxu0
    %v428 = vadd.f32 %v162, %v427
    %v429 = vpop.f32.mrf.mxu0
    %v430 = vadd.f32 %v166, %v429
    %v431 = vpop.f32.mrf.mxu0
    %v432 = vadd.f32 %v162, %v431
    %v433 = vpop.f32.mrf.mxu0
    %v434 = vadd.f32 %v166, %v433
    %435 = vdwg.mxu0
    %v436 = vpack.c.bf16 %v303, %v299
    %v437 = vpack.c.bf16 %v305, %v301
    %v438 = vpack.c.bf16 %v346, %v342
    %v439 = vpack.c.bf16 %v348, %v344
    %v440 = vpack.c.bf16 %v389, %v385
    %v441 = vpack.c.bf16 %v391, %v387
    %v442 = vpack.c.bf16 %v432, %v428
    %v443 = vpack.c.bf16 %v434, %v430
    %v444 = vmul.bf16 %v436, 1009007652
    %v445 = vmul.bf16 %v437, 1009007652
    %v446 = vmul.bf16 %v438, 1009007652
    %v447 = vmul.bf16 %v439, 1009007652
    %v448 = vmul.bf16 %v440, 1009007652
    %v449 = vmul.bf16 %v441, 1009007652
    %v450 = vmul.bf16 %v442, 1009007652
    %v451 = vmul.bf16 %v443, 1009007652
    %v452 = vmax.bf16 %v436, %v444
    %v453 = vmax.bf16 %v437, %v445
    %v454 = vmax.bf16 %v438, %v446
    %v455 = vmax.bf16 %v439, %v447
    %v456 = vmax.bf16 %v440, %v448
    %v457 = vmax.bf16 %v441, %v449
    %v458 = vmax.bf16 %v442, %v450
    %v459 = vmax.bf16 %v443, %v451
    %v460 = vld [vmem:[#allocation8] sm:$0xff]
    %v461 = vld [vmem:[#allocation8 + $0x8] sm:$0xff]
    %v462 = vld [vmem:[#allocation8 + $0x10] sm:$0xff]
    %v463 = vld [vmem:[#allocation8 + $0x18] sm:$0xff]
    %v464 = vld [vmem:[#allocation8 + $0x20] sm:$0xff]
    %v465 = vld [vmem:[#allocation8 + $0x28] sm:$0xff]
    %v466 = vld [vmem:[#allocation8 + $0x30] sm:$0xff]
    %v467 = vld [vmem:[#allocation8 + $0x38] sm:$0xff]
    %v468 = vld [vmem:[#allocation8 + $0x40] sm:$0xff]
    %v469 = vld [vmem:[#allocation8 + $0x48] sm:$0xff]
    %v470 = vld [vmem:[#allocation8 + $0x50] sm:$0xff]
    %v471 = vld [vmem:[#allocation8 + $0x58] sm:$0xff]
    %v472 = vld [vmem:[#allocation8 + $0x60] sm:$0xff]
    %v473 = vld [vmem:[#allocation8 + $0x68] sm:$0xff]
    %v474 = vld [vmem:[#allocation8 + $0x70] sm:$0xff]
    %v475 = vld [vmem:[#allocation8 + $0x78] sm:$0xff]
    %v476 = vld [vmem:[#allocation8 + $0x80] sm:$0xff]
    %v477 = vld [vmem:[#allocation8 + $0x88] sm:$0xff]
    %v478 = vld [vmem:[#allocation8 + $0x90] sm:$0xff]
    %v479 = vld [vmem:[#allocation8 + $0x98] sm:$0xff]
    %v480 = vld [vmem:[#allocation8 + $0xa0] sm:$0xff]
    %v481 = vld [vmem:[#allocation8 + $0xa8] sm:$0xff]
    %v482 = vld [vmem:[#allocation8 + $0xb0] sm:$0xff]
    %v483 = vld [vmem:[#allocation8 + $0xb8] sm:$0xff]
    %v484 = vld [vmem:[#allocation8 + $0xc0] sm:$0xff]
    %v485 = vld [vmem:[#allocation8 + $0xc8] sm:$0xff]
    %v486 = vld [vmem:[#allocation8 + $0xd0] sm:$0xff]
    %v487 = vld [vmem:[#allocation8 + $0xd8] sm:$0xff]
    %v488 = vld [vmem:[#allocation8 + $0xe0] sm:$0xff]
    %v489 = vld [vmem:[#allocation8 + $0xe8] sm:$0xff]
    %v490 = vld [vmem:[#allocation8 + $0xf0] sm:$0xff]
    %v491 = vld [vmem:[#allocation8 + $0xf8] sm:$0xff]
    %v492 = vld [vmem:[#allocation8 + $0x100] sm:$0xff]
    %v493 = vld [vmem:[#allocation8 + $0x108] sm:$0xff]
    %v494 = vld [vmem:[#allocation8 + $0x110] sm:$0xff]
    %v495 = vld [vmem:[#allocation8 + $0x118] sm:$0xff]
    %v496 = vld [vmem:[#allocation8 + $0x120] sm:$0xff]
    %v497 = vld [vmem:[#allocation8 + $0x128] sm:$0xff]
    %v498 = vld [vmem:[#allocation8 + $0x130] sm:$0xff]
    %v499 = vld [vmem:[#allocation8 + $0x138] sm:$0xff]
    %v500 = vld [vmem:[#allocation8 + $0x140] sm:$0xff]
    %v501 = vld [vmem:[#allocation8 + $0x148] sm:$0xff]
    %v502 = vld [vmem:[#allocation8 + $0x150] sm:$0xff]
    %v503 = vld [vmem:[#allocation8 + $0x158] sm:$0xff]
    %v504 = vld [vmem:[#allocation8 + $0x160] sm:$0xff]
    %v505 = vld [vmem:[#allocation8 + $0x168] sm:$0xff]
    %v506 = vld [vmem:[#allocation8 + $0x170] sm:$0xff]
    %v507 = vld [vmem:[#allocation8 + $0x178] sm:$0xff]
    %v508 = vld [vmem:[#allocation8 + $0x180] sm:$0xff]
    %v509 = vld [vmem:[#allocation8 + $0x188] sm:$0xff]
    %v510 = vld [vmem:[#allocation8 + $0x190] sm:$0xff]
    %v511 = vld [vmem:[#allocation8 + $0x198] sm:$0xff]
    %v512 = vld [vmem:[#allocation8 + $0x1a0] sm:$0xff]
    %v513 = vld [vmem:[#allocation8 + $0x1a8] sm:$0xff]
    %v514 = vld [vmem:[#allocation8 + $0x1b0] sm:$0xff]
    %v515 = vld [vmem:[#allocation8 + $0x1b8] sm:$0xff]
    %v516 = vld [vmem:[#allocation8 + $0x1c0] sm:$0xff]
    %v517 = vld [vmem:[#allocation8 + $0x1c8] sm:$0xff]
    %v518 = vld [vmem:[#allocation8 + $0x1d0] sm:$0xff]
    %v519 = vld [vmem:[#allocation8 + $0x1d8] sm:$0xff]
    %v520 = vld [vmem:[#allocation8 + $0x1e0] sm:$0xff]
    %v521 = vld [vmem:[#allocation8 + $0x1e8] sm:$0xff]
    %v522 = vld [vmem:[#allocation8 + $0x1f0] sm:$0xff]
    %v523 = vld [vmem:[#allocation8 + $0x1f8] sm:$0xff]
    %v524 = vld [vmem:[#allocation8 + $0x200] sm:$0xff]
    %v525 = vld [vmem:[#allocation8 + $0x208] sm:$0xff]
    %v526 = vld [vmem:[#allocation8 + $0x210] sm:$0xff]
    %v527 = vld [vmem:[#allocation8 + $0x218] sm:$0xff]
    %v528 = vld [vmem:[#allocation8 + $0x220] sm:$0xff]
    %v529 = vld [vmem:[#allocation8 + $0x228] sm:$0xff]
    %v530 = vld [vmem:[#allocation8 + $0x230] sm:$0xff]
    %v531 = vld [vmem:[#allocation8 + $0x238] sm:$0xff]
    %v532 = vld [vmem:[#allocation8 + $0x240] sm:$0xff]
    %v533 = vld [vmem:[#allocation8 + $0x248] sm:$0xff]
    %v534 = vld [vmem:[#allocation8 + $0x250] sm:$0xff]
    %v535 = vld [vmem:[#allocation8 + $0x258] sm:$0xff]
    %v536 = vld [vmem:[#allocation8 + $0x260] sm:$0xff]
    %v537 = vld [vmem:[#allocation8 + $0x268] sm:$0xff]
    %v538 = vld [vmem:[#allocation8 + $0x270] sm:$0xff]
    %v539 = vld [vmem:[#allocation8 + $0x278] sm:$0xff]
    %v540 = vld [vmem:[#allocation8 + $0x280] sm:$0xff]
    %v541 = vld [vmem:[#allocation8 + $0x288] sm:$0xff]
    %v542 = vld [vmem:[#allocation8 + $0x290] sm:$0xff]
    %v543 = vld [vmem:[#allocation8 + $0x298] sm:$0xff]
    %v544 = vld [vmem:[#allocation8 + $0x2a0] sm:$0xff]
    %v545 = vld [vmem:[#allocation8 + $0x2a8] sm:$0xff]
    %v546 = vld [vmem:[#allocation8 + $0x2b0] sm:$0xff]
    %v547 = vld [vmem:[#allocation8 + $0x2b8] sm:$0xff]
    %v548 = vld [vmem:[#allocation8 + $0x2c0] sm:$0xff]
    %v549 = vld [vmem:[#allocation8 + $0x2c8] sm:$0xff]
    %v550 = vld [vmem:[#allocation8 + $0x2d0] sm:$0xff]
    %v551 = vld [vmem:[#allocation8 + $0x2d8] sm:$0xff]
    %v552 = vld [vmem:[#allocation8 + $0x2e0] sm:$0xff]
    %v553 = vld [vmem:[#allocation8 + $0x2e8] sm:$0xff]
    %v554 = vld [vmem:[#allocation8 + $0x2f0] sm:$0xff]
    %v555 = vld [vmem:[#allocation8 + $0x2f8] sm:$0xff]
    %v556 = vld [vmem:[#allocation8 + $0x300] sm:$0xff]
    %v557 = vld [vmem:[#allocation8 + $0x308] sm:$0xff]
    %v558 = vld [vmem:[#allocation8 + $0x310] sm:$0xff]
    %v559 = vld [vmem:[#allocation8 + $0x318] sm:$0xff]
    %v560 = vld [vmem:[#allocation8 + $0x320] sm:$0xff]
    %v561 = vld [vmem:[#allocation8 + $0x328] sm:$0xff]
    %v562 = vld [vmem:[#allocation8 + $0x330] sm:$0xff]
    %v563 = vld [vmem:[#allocation8 + $0x338] sm:$0xff]
    %v564 = vld [vmem:[#allocation8 + $0x340] sm:$0xff]
    %v565 = vld [vmem:[#allocation8 + $0x348] sm:$0xff]
    %v566 = vld [vmem:[#allocation8 + $0x350] sm:$0xff]
    %v567 = vld [vmem:[#allocation8 + $0x358] sm:$0xff]
    %v568 = vld [vmem:[#allocation8 + $0x360] sm:$0xff]
    %v569 = vld [vmem:[#allocation8 + $0x368] sm:$0xff]
    %v570 = vld [vmem:[#allocation8 + $0x370] sm:$0xff]
    %v571 = vld [vmem:[#allocation8 + $0x378] sm:$0xff]
    %v572 = vld [vmem:[#allocation8 + $0x380] sm:$0xff]
    %v573 = vld [vmem:[#allocation8 + $0x388] sm:$0xff]
    %v574 = vld [vmem:[#allocation8 + $0x390] sm:$0xff]
    %v575 = vld [vmem:[#allocation8 + $0x398] sm:$0xff]
    %v576 = vld [vmem:[#allocation8 + $0x3a0] sm:$0xff]
    %v577 = vld [vmem:[#allocation8 + $0x3a8] sm:$0xff]
    %v578 = vld [vmem:[#allocation8 + $0x3b0] sm:$0xff]
    %v579 = vld [vmem:[#allocation8 + $0x3b8] sm:$0xff]
    %v580 = vld [vmem:[#allocation8 + $0x3c0] sm:$0xff]
    %v581 = vld [vmem:[#allocation8 + $0x3c8] sm:$0xff]
    %v582 = vld [vmem:[#allocation8 + $0x3d0] sm:$0xff]
    %v583 = vld [vmem:[#allocation8 + $0x3d8] sm:$0xff]
    %v584 = vld [vmem:[#allocation8 + $0x3e0] sm:$0xff]
    %v585 = vld [vmem:[#allocation8 + $0x3e8] sm:$0xff]
    %v586 = vld [vmem:[#allocation8 + $0x3f0] sm:$0xff]
    %v587 = vld [vmem:[#allocation8 + $0x3f8] sm:$0xff]
    %v588 = vld [vmem:[#allocation8 + $0x400] sm:$0xff]
    %v589 = vld [vmem:[#allocation8 + $0x408] sm:$0xff]
    %v590 = vld [vmem:[#allocation8 + $0x410] sm:$0xff]
    %v591 = vld [vmem:[#allocation8 + $0x418] sm:$0xff]
    %v592 = vld [vmem:[#allocation8 + $0x420] sm:$0xff]
    %v593 = vld [vmem:[#allocation8 + $0x428] sm:$0xff]
    %v594 = vld [vmem:[#allocation8 + $0x430] sm:$0xff]
    %v595 = vld [vmem:[#allocation8 + $0x438] sm:$0xff]
    %v596 = vld [vmem:[#allocation8 + $0x440] sm:$0xff]
    %v597 = vld [vmem:[#allocation8 + $0x448] sm:$0xff]
    %v598 = vld [vmem:[#allocation8 + $0x450] sm:$0xff]
    %v599 = vld [vmem:[#allocation8 + $0x458] sm:$0xff]
    %v600 = vld [vmem:[#allocation8 + $0x460] sm:$0xff]
    %v601 = vld [vmem:[#allocation8 + $0x468] sm:$0xff]
    %v602 = vld [vmem:[#allocation8 + $0x470] sm:$0xff]
    %v603 = vld [vmem:[#allocation8 + $0x478] sm:$0xff]
    %v604 = vld [vmem:[#allocation8 + $0x480] sm:$0xff]
    %v605 = vld [vmem:[#allocation8 + $0x488] sm:$0xff]
    %v606 = vld [vmem:[#allocation8 + $0x490] sm:$0xff]
    %v607 = vld [vmem:[#allocation8 + $0x498] sm:$0xff]
    %v608 = vld [vmem:[#allocation8 + $0x4a0] sm:$0xff]
    %v609 = vld [vmem:[#allocation8 + $0x4a8] sm:$0xff]
    %v610 = vld [vmem:[#allocation8 + $0x4b0] sm:$0xff]
    %v611 = vld [vmem:[#allocation8 + $0x4b8] sm:$0xff]
    %v612 = vld [vmem:[#allocation8 + $0x4c0] sm:$0xff]
    %v613 = vld [vmem:[#allocation8 + $0x4c8] sm:$0xff]
    %v614 = vld [vmem:[#allocation8 + $0x4d0] sm:$0xff]
    %v615 = vld [vmem:[#allocation8 + $0x4d8] sm:$0xff]
    %v616 = vld [vmem:[#allocation8 + $0x4e0] sm:$0xff]
    %v617 = vld [vmem:[#allocation8 + $0x4e8] sm:$0xff]
    %v618 = vld [vmem:[#allocation8 + $0x4f0] sm:$0xff]
    %v619 = vld [vmem:[#allocation8 + $0x4f8] sm:$0xff]
    %v620 = vld [vmem:[#allocation8 + $0x500] sm:$0xff]
    %v621 = vld [vmem:[#allocation8 + $0x508] sm:$0xff]
    %v622 = vld [vmem:[#allocation8 + $0x510] sm:$0xff]
    %v623 = vld [vmem:[#allocation8 + $0x518] sm:$0xff]
    %v624 = vld [vmem:[#allocation8 + $0x520] sm:$0xff]
    %v625 = vld [vmem:[#allocation8 + $0x528] sm:$0xff]
    %v626 = vld [vmem:[#allocation8 + $0x530] sm:$0xff]
    %v627 = vld [vmem:[#allocation8 + $0x538] sm:$0xff]
    %v628 = vld [vmem:[#allocation8 + $0x540] sm:$0xff]
    %v629 = vld [vmem:[#allocation8 + $0x548] sm:$0xff]
    %v630 = vld [vmem:[#allocation8 + $0x550] sm:$0xff]
    %v631 = vld [vmem:[#allocation8 + $0x558] sm:$0xff]
    %v632 = vld [vmem:[#allocation8 + $0x560] sm:$0xff]
    %v633 = vld [vmem:[#allocation8 + $0x568] sm:$0xff]
    %v634 = vld [vmem:[#allocation8 + $0x570] sm:$0xff]
    %v635 = vld [vmem:[#allocation8 + $0x578] sm:$0xff]
    %v636 = vld [vmem:[#allocation8 + $0x580] sm:$0xff]
    %v637 = vld [vmem:[#allocation8 + $0x588] sm:$0xff]
    %v638 = vld [vmem:[#allocation8 + $0x590] sm:$0xff]
    %v639 = vld [vmem:[#allocation8 + $0x598] sm:$0xff]
    %v640 = vld [vmem:[#allocation8 + $0x5a0] sm:$0xff]
    %v641 = vld [vmem:[#allocation8 + $0x5a8] sm:$0xff]
    %v642 = vld [vmem:[#allocation8 + $0x5b0] sm:$0xff]
    %v643 = vld [vmem:[#allocation8 + $0x5b8] sm:$0xff]
    %v644 = vld [vmem:[#allocation8 + $0x5c0] sm:$0xff]
    %v645 = vld [vmem:[#allocation8 + $0x5c8] sm:$0xff]
    %v646 = vld [vmem:[#allocation8 + $0x5d0] sm:$0xff]
    %v647 = vld [vmem:[#allocation8 + $0x5d8] sm:$0xff]
    %v648 = vld [vmem:[#allocation8 + $0x5e0] sm:$0xff]
    %v649 = vld [vmem:[#allocation8 + $0x5e8] sm:$0xff]
    %v650 = vld [vmem:[#allocation8 + $0x5f0] sm:$0xff]
    %v651 = vld [vmem:[#allocation8 + $0x5f8] sm:$0xff]
    %v652 = vld [vmem:[#allocation8 + $0x600] sm:$0xff]
    %v653 = vld [vmem:[#allocation8 + $0x608] sm:$0xff]
    %v654 = vld [vmem:[#allocation8 + $0x610] sm:$0xff]
    %v655 = vld [vmem:[#allocation8 + $0x618] sm:$0xff]
    %v656 = vld [vmem:[#allocation8 + $0x620] sm:$0xff]
    %v657 = vld [vmem:[#allocation8 + $0x628] sm:$0xff]
    %v658 = vld [vmem:[#allocation8 + $0x630] sm:$0xff]
    %v659 = vld [vmem:[#allocation8 + $0x638] sm:$0xff]
    %v660 = vld [vmem:[#allocation8 + $0x640] sm:$0xff]
    %v661 = vld [vmem:[#allocation8 + $0x648] sm:$0xff]
    %v662 = vld [vmem:[#allocation8 + $0x650] sm:$0xff]
    %v663 = vld [vmem:[#allocation8 + $0x658] sm:$0xff]
    %v664 = vld [vmem:[#allocation8 + $0x660] sm:$0xff]
    %v665 = vld [vmem:[#allocation8 + $0x668] sm:$0xff]
    %v666 = vld [vmem:[#allocation8 + $0x670] sm:$0xff]
    %v667 = vld [vmem:[#allocation8 + $0x678] sm:$0xff]
    %v668 = vld [vmem:[#allocation8 + $0x680] sm:$0xff]
    %v669 = vld [vmem:[#allocation8 + $0x688] sm:$0xff]
    %v670 = vld [vmem:[#allocation8 + $0x690] sm:$0xff]
    %v671 = vld [vmem:[#allocation8 + $0x698] sm:$0xff]
    %v672 = vld [vmem:[#allocation8 + $0x6a0] sm:$0xff]
    %v673 = vld [vmem:[#allocation8 + $0x6a8] sm:$0xff]
    %v674 = vld [vmem:[#allocation8 + $0x6b0] sm:$0xff]
    %v675 = vld [vmem:[#allocation8 + $0x6b8] sm:$0xff]
    %v676 = vld [vmem:[#allocation8 + $0x6c0] sm:$0xff]
    %v677 = vld [vmem:[#allocation8 + $0x6c8] sm:$0xff]
    %v678 = vld [vmem:[#allocation8 + $0x6d0] sm:$0xff]
    %v679 = vld [vmem:[#allocation8 + $0x6d8] sm:$0xff]
    %v680 = vld [vmem:[#allocation8 + $0x6e0] sm:$0xff]
    %v681 = vld [vmem:[#allocation8 + $0x6e8] sm:$0xff]
    %v682 = vld [vmem:[#allocation8 + $0x6f0] sm:$0xff]
    %v683 = vld [vmem:[#allocation8 + $0x6f8] sm:$0xff]
    %v684 = vld [vmem:[#allocation8 + $0x700] sm:$0xff]
    %v685 = vld [vmem:[#allocation8 + $0x708] sm:$0xff]
    %v686 = vld [vmem:[#allocation8 + $0x710] sm:$0xff]
    %v687 = vld [vmem:[#allocation8 + $0x718] sm:$0xff]
    %v688 = vld [vmem:[#allocation8 + $0x720] sm:$0xff]
    %v689 = vld [vmem:[#allocation8 + $0x728] sm:$0xff]
    %v690 = vld [vmem:[#allocation8 + $0x730] sm:$0xff]
    %v691 = vld [vmem:[#allocation8 + $0x738] sm:$0xff]
    %v692 = vld [vmem:[#allocation8 + $0x740] sm:$0xff]
    %v693 = vld [vmem:[#allocation8 + $0x748] sm:$0xff]
    %v694 = vld [vmem:[#allocation8 + $0x750] sm:$0xff]
    %v695 = vld [vmem:[#allocation8 + $0x758] sm:$0xff]
    %v696 = vld [vmem:[#allocation8 + $0x760] sm:$0xff]
    %v697 = vld [vmem:[#allocation8 + $0x768] sm:$0xff]
    %v698 = vld [vmem:[#allocation8 + $0x770] sm:$0xff]
    %v699 = vld [vmem:[#allocation8 + $0x778] sm:$0xff]
    %v700 = vld [vmem:[#allocation8 + $0x780] sm:$0xff]
    %v701 = vld [vmem:[#allocation8 + $0x788] sm:$0xff]
    %v702 = vld [vmem:[#allocation8 + $0x790] sm:$0xff]
    %v703 = vld [vmem:[#allocation8 + $0x798] sm:$0xff]
    %v704 = vld [vmem:[#allocation8 + $0x7a0] sm:$0xff]
    %v705 = vld [vmem:[#allocation8 + $0x7a8] sm:$0xff]
    %v706 = vld [vmem:[#allocation8 + $0x7b0] sm:$0xff]
    %v707 = vld [vmem:[#allocation8 + $0x7b8] sm:$0xff]
    %v708 = vld [vmem:[#allocation8 + $0x7c0] sm:$0xff]
    %v709 = vld [vmem:[#allocation8 + $0x7c8] sm:$0xff]
    %v710 = vld [vmem:[#allocation8 + $0x7d0] sm:$0xff]
    %v711 = vld [vmem:[#allocation8 + $0x7d8] sm:$0xff]
    %v712 = vld [vmem:[#allocation8 + $0x7e0] sm:$0xff]
    %v713 = vld [vmem:[#allocation8 + $0x7e8] sm:$0xff]
    %v714 = vld [vmem:[#allocation8 + $0x7f0] sm:$0xff]
    %v715 = vld [vmem:[#allocation8 + $0x7f8] sm:$0xff]
    %v716 = vld [vmem:[%s4] sm:$0xf]
    %v718 = vlaneseq
    %v719 = vshrl.u32 %v718, 7
    %v720 = vsub.s32 0, %v719
    %v721 = vrot.slane %v716, %v720
    %v722 = vlaneseq
    %v723 = vshrl.u32 %v722, 7
    %v724 = vsub.s32 1, %v723
    %v725 = vrot.slane %v716, %v724
    %v726 = vlaneseq
    %v727 = vshrl.u32 %v726, 7
    %v728 = vsub.s32 2, %v727
    %v729 = vrot.slane %v716, %v728
    %v730 = vlaneseq
    %v731 = vshrl.u32 %v730, 7
    %v732 = vsub.s32 3, %v731
    %v733 = vrot.slane %v716, %v732
    %v994 = vunpack.c.l.b16 %v460
    %v995 = vunpack.c.h.b16 %v460
    %v996 = vunpack.c.l.b16 %v461
    %v997 = vunpack.c.h.b16 %v461
    %v998 = vunpack.c.l.b16 %v462
    %v999 = vunpack.c.h.b16 %v462
    %v1000 = vunpack.c.l.b16 %v463
    %v1001 = vunpack.c.h.b16 %v463
    %v1002 = vunpack.c.l.b16 %v464
    %v1003 = vunpack.c.h.b16 %v464
    %v1004 = vunpack.c.l.b16 %v465
    %v1005 = vunpack.c.h.b16 %v465
    %v1006 = vunpack.c.l.b16 %v466
    %v1007 = vunpack.c.h.b16 %v466
    %v1008 = vunpack.c.l.b16 %v467
    %v1009 = vunpack.c.h.b16 %v467
    %v1010 = vunpack.c.l.b16 %v468
    %v1011 = vunpack.c.h.b16 %v468
    %v1012 = vunpack.c.l.b16 %v469
    %v1013 = vunpack.c.h.b16 %v469
    %v1014 = vunpack.c.l.b16 %v470
    %v1015 = vunpack.c.h.b16 %v470
    %v1016 = vunpack.c.l.b16 %v471
    %v1017 = vunpack.c.h.b16 %v471
    %v1018 = vunpack.c.l.b16 %v472
    %v1019 = vunpack.c.h.b16 %v472
    %v1020 = vunpack.c.l.b16 %v473
    %v1021 = vunpack.c.h.b16 %v473
    %v1022 = vunpack.c.l.b16 %v474
    %v1023 = vunpack.c.h.b16 %v474
    %v1024 = vunpack.c.l.b16 %v475
    %v1025 = vunpack.c.h.b16 %v475
    %v1026 = vunpack.c.l.b16 %v476
    %v1027 = vunpack.c.h.b16 %v476
    %v1028 = vunpack.c.l.b16 %v477
    %v1029 = vunpack.c.h.b16 %v477
    %v1030 = vunpack.c.l.b16 %v478
    %v1031 = vunpack.c.h.b16 %v478
    %v1032 = vunpack.c.l.b16 %v479
    %v1033 = vunpack.c.h.b16 %v479
    %v1034 = vunpack.c.l.b16 %v480
    %v1035 = vunpack.c.h.b16 %v480
    %v1036 = vunpack.c.l.b16 %v481
    %v1037 = vunpack.c.h.b16 %v481
    %v1038 = vunpack.c.l.b16 %v482
    %v1039 = vunpack.c.h.b16 %v482
    %v1040 = vunpack.c.l.b16 %v483
    %v1041 = vunpack.c.h.b16 %v483
    %v1042 = vunpack.c.l.b16 %v484
    %v1043 = vunpack.c.h.b16 %v484
    %v1044 = vunpack.c.l.b16 %v485
    %v1045 = vunpack.c.h.b16 %v485
    %v1046 = vunpack.c.l.b16 %v486
    %v1047 = vunpack.c.h.b16 %v486
    %v1048 = vunpack.c.l.b16 %v487
    %v1049 = vunpack.c.h.b16 %v487
    %v1050 = vunpack.c.l.b16 %v488
    %v1051 = vunpack.c.h.b16 %v488
    %v1052 = vunpack.c.l.b16 %v489
    %v1053 = vunpack.c.h.b16 %v489
    %v1054 = vunpack.c.l.b16 %v490
    %v1055 = vunpack.c.h.b16 %v490
    %v1056 = vunpack.c.l.b16 %v491
    %v1057 = vunpack.c.h.b16 %v491
    %v1058 = vunpack.c.l.b16 %v492
    %v1059 = vunpack.c.h.b16 %v492
    %v1060 = vunpack.c.l.b16 %v493
    %v1061 = vunpack.c.h.b16 %v493
    %v1062 = vunpack.c.l.b16 %v494
    %v1063 = vunpack.c.h.b16 %v494
    %v1064 = vunpack.c.l.b16 %v495
    %v1065 = vunpack.c.h.b16 %v495
    %v1066 = vunpack.c.l.b16 %v496
    %v1067 = vunpack.c.h.b16 %v496
    %v1068 = vunpack.c.l.b16 %v497
    %v1069 = vunpack.c.h.b16 %v497
    %v1070 = vunpack.c.l.b16 %v498
    %v1071 = vunpack.c.h.b16 %v498
    %v1072 = vunpack.c.l.b16 %v499
    %v1073 = vunpack.c.h.b16 %v499
    %v1074 = vunpack.c.l.b16 %v500
    %v1075 = vunpack.c.h.b16 %v500
    %v1076 = vunpack.c.l.b16 %v501
    %v1077 = vunpack.c.h.b16 %v501
    %v1078 = vunpack.c.l.b16 %v502
    %v1079 = vunpack.c.h.b16 %v502
    %v1080 = vunpack.c.l.b16 %v503
    %v1081 = vunpack.c.h.b16 %v503
    %v1082 = vunpack.c.l.b16 %v504
    %v1083 = vunpack.c.h.b16 %v504
    %v1084 = vunpack.c.l.b16 %v505
    %v1085 = vunpack.c.h.b16 %v505
    %v1086 = vunpack.c.l.b16 %v506
    %v1087 = vunpack.c.h.b16 %v506
    %v1088 = vunpack.c.l.b16 %v507
    %v1089 = vunpack.c.h.b16 %v507
    %v1090 = vunpack.c.l.b16 %v508
    %v1091 = vunpack.c.h.b16 %v508
    %v1092 = vunpack.c.l.b16 %v509
    %v1093 = vunpack.c.h.b16 %v509
    %v1094 = vunpack.c.l.b16 %v510
    %v1095 = vunpack.c.h.b16 %v510
    %v1096 = vunpack.c.l.b16 %v511
    %v1097 = vunpack.c.h.b16 %v511
    %v1098 = vunpack.c.l.b16 %v512
    %v1099 = vunpack.c.h.b16 %v512
    %v1100 = vunpack.c.l.b16 %v513
    %v1101 = vunpack.c.h.b16 %v513
    %v1102 = vunpack.c.l.b16 %v514
    %v1103 = vunpack.c.h.b16 %v514
    %v1104 = vunpack.c.l.b16 %v515
    %v1105 = vunpack.c.h.b16 %v515
    %v1106 = vunpack.c.l.b16 %v516
    %v1107 = vunpack.c.h.b16 %v516
    %v1108 = vunpack.c.l.b16 %v517
    %v1109 = vunpack.c.h.b16 %v517
    %v1110 = vunpack.c.l.b16 %v518
    %v1111 = vunpack.c.h.b16 %v518
    %v1112 = vunpack.c.l.b16 %v519
    %v1113 = vunpack.c.h.b16 %v519
    %v1114 = vunpack.c.l.b16 %v520
    %v1115 = vunpack.c.h.b16 %v520
    %v1116 = vunpack.c.l.b16 %v521
    %v1117 = vunpack.c.h.b16 %v521
    %v1118 = vunpack.c.l.b16 %v522
    %v1119 = vunpack.c.h.b16 %v522
    %v1120 = vunpack.c.l.b16 %v523
    %v1121 = vunpack.c.h.b16 %v523
    %v1122 = vunpack.c.l.b16 %v524
    %v1123 = vunpack.c.h.b16 %v524
    %v1124 = vunpack.c.l.b16 %v525
    %v1125 = vunpack.c.h.b16 %v525
    %v1126 = vunpack.c.l.b16 %v526
    %v1127 = vunpack.c.h.b16 %v526
    %v1128 = vunpack.c.l.b16 %v527
    %v1129 = vunpack.c.h.b16 %v527
    %v1130 = vunpack.c.l.b16 %v528
    %v1131 = vunpack.c.h.b16 %v528
    %v1132 = vunpack.c.l.b16 %v529
    %v1133 = vunpack.c.h.b16 %v529
    %v1134 = vunpack.c.l.b16 %v530
    %v1135 = vunpack.c.h.b16 %v530
    %v1136 = vunpack.c.l.b16 %v531
    %v1137 = vunpack.c.h.b16 %v531
    %v1138 = vunpack.c.l.b16 %v532
    %v1139 = vunpack.c.h.b16 %v532
    %v1140 = vunpack.c.l.b16 %v533
    %v1141 = vunpack.c.h.b16 %v533
    %v1142 = vunpack.c.l.b16 %v534
    %v1143 = vunpack.c.h.b16 %v534
    %v1144 = vunpack.c.l.b16 %v535
    %v1145 = vunpack.c.h.b16 %v535
    %v1146 = vunpack.c.l.b16 %v536
    %v1147 = vunpack.c.h.b16 %v536
    %v1148 = vunpack.c.l.b16 %v537
    %v1149 = vunpack.c.h.b16 %v537
    %v1150 = vunpack.c.l.b16 %v538
    %v1151 = vunpack.c.h.b16 %v538
    %v1152 = vunpack.c.l.b16 %v539
    %v1153 = vunpack.c.h.b16 %v539
    %v1154 = vunpack.c.l.b16 %v540
    %v1155 = vunpack.c.h.b16 %v540
    %v1156 = vunpack.c.l.b16 %v541
    %v1157 = vunpack.c.h.b16 %v541
    %v1158 = vunpack.c.l.b16 %v542
    %v1159 = vunpack.c.h.b16 %v542
    %v1160 = vunpack.c.l.b16 %v543
    %v1161 = vunpack.c.h.b16 %v543
    %v1162 = vunpack.c.l.b16 %v544
    %v1163 = vunpack.c.h.b16 %v544
    %v1164 = vunpack.c.l.b16 %v545
    %v1165 = vunpack.c.h.b16 %v545
    %v1166 = vunpack.c.l.b16 %v546
    %v1167 = vunpack.c.h.b16 %v546
    %v1168 = vunpack.c.l.b16 %v547
    %v1169 = vunpack.c.h.b16 %v547
    %v1170 = vunpack.c.l.b16 %v548
    %v1171 = vunpack.c.h.b16 %v548
    %v1172 = vunpack.c.l.b16 %v549
    %v1173 = vunpack.c.h.b16 %v549
    %v1174 = vunpack.c.l.b16 %v550
    %v1175 = vunpack.c.h.b16 %v550
    %v1176 = vunpack.c.l.b16 %v551
    %v1177 = vunpack.c.h.b16 %v551
    %v1178 = vunpack.c.l.b16 %v552
    %v1179 = vunpack.c.h.b16 %v552
    %v1180 = vunpack.c.l.b16 %v553
    %v1181 = vunpack.c.h.b16 %v553
    %v1182 = vunpack.c.l.b16 %v554
    %v1183 = vunpack.c.h.b16 %v554
    %v1184 = vunpack.c.l.b16 %v555
    %v1185 = vunpack.c.h.b16 %v555
    %v1186 = vunpack.c.l.b16 %v556
    %v1187 = vunpack.c.h.b16 %v556
    %v1188 = vunpack.c.l.b16 %v557
    %v1189 = vunpack.c.h.b16 %v557
    %v1190 = vunpack.c.l.b16 %v558
    %v1191 = vunpack.c.h.b16 %v558
    %v1192 = vunpack.c.l.b16 %v559
    %v1193 = vunpack.c.h.b16 %v559
    %v1194 = vunpack.c.l.b16 %v560
    %v1195 = vunpack.c.h.b16 %v560
    %v1196 = vunpack.c.l.b16 %v561
    %v1197 = vunpack.c.h.b16 %v561
    %v1198 = vunpack.c.l.b16 %v562
    %v1199 = vunpack.c.h.b16 %v562
    %v1200 = vunpack.c.l.b16 %v563
    %v1201 = vunpack.c.h.b16 %v563
    %v1202 = vunpack.c.l.b16 %v564
    %v1203 = vunpack.c.h.b16 %v564
    %v1204 = vunpack.c.l.b16 %v565
    %v1205 = vunpack.c.h.b16 %v565
    %v1206 = vunpack.c.l.b16 %v566
    %v1207 = vunpack.c.h.b16 %v566
    %v1208 = vunpack.c.l.b16 %v567
    %v1209 = vunpack.c.h.b16 %v567
    %v1210 = vunpack.c.l.b16 %v568
    %v1211 = vunpack.c.h.b16 %v568
    %v1212 = vunpack.c.l.b16 %v569
    %v1213 = vunpack.c.h.b16 %v569
    %v1214 = vunpack.c.l.b16 %v570
    %v1215 = vunpack.c.h.b16 %v570
    %v1216 = vunpack.c.l.b16 %v571
    %v1217 = vunpack.c.h.b16 %v571
    %v1218 = vunpack.c.l.b16 %v572
    %v1219 = vunpack.c.h.b16 %v572
    %v1220 = vunpack.c.l.b16 %v573
    %v1221 = vunpack.c.h.b16 %v573
    %v1222 = vunpack.c.l.b16 %v574
    %v1223 = vunpack.c.h.b16 %v574
    %v1224 = vunpack.c.l.b16 %v575
    %v1225 = vunpack.c.h.b16 %v575
    %v1226 = vunpack.c.l.b16 %v576
    %v1227 = vunpack.c.h.b16 %v576
    %v1228 = vunpack.c.l.b16 %v577
    %v1229 = vunpack.c.h.b16 %v577
    %v1230 = vunpack.c.l.b16 %v578
    %v1231 = vunpack.c.h.b16 %v578
    %v1232 = vunpack.c.l.b16 %v579
    %v1233 = vunpack.c.h.b16 %v579
    %v1234 = vunpack.c.l.b16 %v580
    %v1235 = vunpack.c.h.b16 %v580
    %v1236 = vunpack.c.l.b16 %v581
    %v1237 = vunpack.c.h.b16 %v581
    %v1238 = vunpack.c.l.b16 %v582
    %v1239 = vunpack.c.h.b16 %v582
    %v1240 = vunpack.c.l.b16 %v583
    %v1241 = vunpack.c.h.b16 %v583
    %v1242 = vunpack.c.l.b16 %v584
    %v1243 = vunpack.c.h.b16 %v584
    %v1244 = vunpack.c.l.b16 %v585
    %v1245 = vunpack.c.h.b16 %v585
    %v1246 = vunpack.c.l.b16 %v586
    %v1247 = vunpack.c.h.b16 %v586
    %v1248 = vunpack.c.l.b16 %v587
    %v1249 = vunpack.c.h.b16 %v587
    %v1250 = vunpack.c.l.b16 %v588
    %v1251 = vunpack.c.h.b16 %v588
    %v1252 = vunpack.c.l.b16 %v589
    %v1253 = vunpack.c.h.b16 %v589
    %v1254 = vunpack.c.l.b16 %v590
    %v1255 = vunpack.c.h.b16 %v590
    %v1256 = vunpack.c.l.b16 %v591
    %v1257 = vunpack.c.h.b16 %v591
    %v1258 = vunpack.c.l.b16 %v592
    %v1259 = vunpack.c.h.b16 %v592
    %v1260 = vunpack.c.l.b16 %v593
    %v1261 = vunpack.c.h.b16 %v593
    %v1262 = vunpack.c.l.b16 %v594
    %v1263 = vunpack.c.h.b16 %v594
    %v1264 = vunpack.c.l.b16 %v595
    %v1265 = vunpack.c.h.b16 %v595
    %v1266 = vunpack.c.l.b16 %v596
    %v1267 = vunpack.c.h.b16 %v596
    %v1268 = vunpack.c.l.b16 %v597
    %v1269 = vunpack.c.h.b16 %v597
    %v1270 = vunpack.c.l.b16 %v598
    %v1271 = vunpack.c.h.b16 %v598
    %v1272 = vunpack.c.l.b16 %v599
    %v1273 = vunpack.c.h.b16 %v599
    %v1274 = vunpack.c.l.b16 %v600
    %v1275 = vunpack.c.h.b16 %v600
    %v1276 = vunpack.c.l.b16 %v601
    %v1277 = vunpack.c.h.b16 %v601
    %v1278 = vunpack.c.l.b16 %v602
    %v1279 = vunpack.c.h.b16 %v602
    %v1280 = vunpack.c.l.b16 %v603
    %v1281 = vunpack.c.h.b16 %v603
    %v1282 = vunpack.c.l.b16 %v604
    %v1283 = vunpack.c.h.b16 %v604
    %v1284 = vunpack.c.l.b16 %v605
    %v1285 = vunpack.c.h.b16 %v605
    %v1286 = vunpack.c.l.b16 %v606
    %v1287 = vunpack.c.h.b16 %v606
    %v1288 = vunpack.c.l.b16 %v607
    %v1289 = vunpack.c.h.b16 %v607
    %v1290 = vunpack.c.l.b16 %v608
    %v1291 = vunpack.c.h.b16 %v608
    %v1292 = vunpack.c.l.b16 %v609
    %v1293 = vunpack.c.h.b16 %v609
    %v1294 = vunpack.c.l.b16 %v610
    %v1295 = vunpack.c.h.b16 %v610
    %v1296 = vunpack.c.l.b16 %v611
    %v1297 = vunpack.c.h.b16 %v611
    %v1298 = vunpack.c.l.b16 %v612
    %v1299 = vunpack.c.h.b16 %v612
    %v1300 = vunpack.c.l.b16 %v613
    %v1301 = vunpack.c.h.b16 %v613
    %v1302 = vunpack.c.l.b16 %v614
    %v1303 = vunpack.c.h.b16 %v614
    %v1304 = vunpack.c.l.b16 %v615
    %v1305 = vunpack.c.h.b16 %v615
    %v1306 = vunpack.c.l.b16 %v616
    %v1307 = vunpack.c.h.b16 %v616
    %v1308 = vunpack.c.l.b16 %v617
    %v1309 = vunpack.c.h.b16 %v617
    %v1310 = vunpack.c.l.b16 %v618
    %v1311 = vunpack.c.h.b16 %v618
    %v1312 = vunpack.c.l.b16 %v619
    %v1313 = vunpack.c.h.b16 %v619
    %v1314 = vunpack.c.l.b16 %v620
    %v1315 = vunpack.c.h.b16 %v620
    %v1316 = vunpack.c.l.b16 %v621
    %v1317 = vunpack.c.h.b16 %v621
    %v1318 = vunpack.c.l.b16 %v622
    %v1319 = vunpack.c.h.b16 %v622
    %v1320 = vunpack.c.l.b16 %v623
    %v1321 = vunpack.c.h.b16 %v623
    %v1322 = vunpack.c.l.b16 %v624
    %v1323 = vunpack.c.h.b16 %v624
    %v1324 = vunpack.c.l.b16 %v625
    %v1325 = vunpack.c.h.b16 %v625
    %v1326 = vunpack.c.l.b16 %v626
    %v1327 = vunpack.c.h.b16 %v626
    %v1328 = vunpack.c.l.b16 %v627
    %v1329 = vunpack.c.h.b16 %v627
    %v1330 = vunpack.c.l.b16 %v628
    %v1331 = vunpack.c.h.b16 %v628
    %v1332 = vunpack.c.l.b16 %v629
    %v1333 = vunpack.c.h.b16 %v629
    %v1334 = vunpack.c.l.b16 %v630
    %v1335 = vunpack.c.h.b16 %v630
    %v1336 = vunpack.c.l.b16 %v631
    %v1337 = vunpack.c.h.b16 %v631
    %v1338 = vunpack.c.l.b16 %v632
    %v1339 = vunpack.c.h.b16 %v632
    %v1340 = vunpack.c.l.b16 %v633
    %v1341 = vunpack.c.h.b16 %v633
    %v1342 = vunpack.c.l.b16 %v634
    %v1343 = vunpack.c.h.b16 %v634
    %v1344 = vunpack.c.l.b16 %v635
    %v1345 = vunpack.c.h.b16 %v635
    %v1346 = vunpack.c.l.b16 %v636
    %v1347 = vunpack.c.h.b16 %v636
    %v1348 = vunpack.c.l.b16 %v637
    %v1349 = vunpack.c.h.b16 %v637
    %v1350 = vunpack.c.l.b16 %v638
    %v1351 = vunpack.c.h.b16 %v638
    %v1352 = vunpack.c.l.b16 %v639
    %v1353 = vunpack.c.h.b16 %v639
    %v1354 = vunpack.c.l.b16 %v640
    %v1355 = vunpack.c.h.b16 %v640
    %v1356 = vunpack.c.l.b16 %v641
    %v1357 = vunpack.c.h.b16 %v641
    %v1358 = vunpack.c.l.b16 %v642
    %v1359 = vunpack.c.h.b16 %v642
    %v1360 = vunpack.c.l.b16 %v643
    %v1361 = vunpack.c.h.b16 %v643
    %v1362 = vunpack.c.l.b16 %v644
    %v1363 = vunpack.c.h.b16 %v644
    %v1364 = vunpack.c.l.b16 %v645
    %v1365 = vunpack.c.h.b16 %v645
    %v1366 = vunpack.c.l.b16 %v646
    %v1367 = vunpack.c.h.b16 %v646
    %v1368 = vunpack.c.l.b16 %v647
    %v1369 = vunpack.c.h.b16 %v647
    %v1370 = vunpack.c.l.b16 %v648
    %v1371 = vunpack.c.h.b16 %v648
    %v1372 = vunpack.c.l.b16 %v649
    %v1373 = vunpack.c.h.b16 %v649
    %v1374 = vunpack.c.l.b16 %v650
    %v1375 = vunpack.c.h.b16 %v650
    %v1376 = vunpack.c.l.b16 %v651
    %v1377 = vunpack.c.h.b16 %v651
    %v1378 = vunpack.c.l.b16 %v652
    %v1379 = vunpack.c.h.b16 %v652
    %v1380 = vunpack.c.l.b16 %v653
    %v1381 = vunpack.c.h.b16 %v653
    %v1382 = vunpack.c.l.b16 %v654
    %v1383 = vunpack.c.h.b16 %v654
    %v1384 = vunpack.c.l.b16 %v655
    %v1385 = vunpack.c.h.b16 %v655
    %v1386 = vunpack.c.l.b16 %v656
    %v1387 = vunpack.c.h.b16 %v656
    %v1388 = vunpack.c.l.b16 %v657
    %v1389 = vunpack.c.h.b16 %v657
    %v1390 = vunpack.c.l.b16 %v658
    %v1391 = vunpack.c.h.b16 %v658
    %v1392 = vunpack.c.l.b16 %v659
    %v1393 = vunpack.c.h.b16 %v659
    %v1394 = vunpack.c.l.b16 %v660
    %v1395 = vunpack.c.h.b16 %v660
    %v1396 = vunpack.c.l.b16 %v661
    %v1397 = vunpack.c.h.b16 %v661
    %v1398 = vunpack.c.l.b16 %v662
    %v1399 = vunpack.c.h.b16 %v662
    %v1400 = vunpack.c.l.b16 %v663
    %v1401 = vunpack.c.h.b16 %v663
    %v1402 = vunpack.c.l.b16 %v664
    %v1403 = vunpack.c.h.b16 %v664
    %v1404 = vunpack.c.l.b16 %v665
    %v1405 = vunpack.c.h.b16 %v665
    %v1406 = vunpack.c.l.b16 %v666
    %v1407 = vunpack.c.h.b16 %v666
    %v1408 = vunpack.c.l.b16 %v667
    %v1409 = vunpack.c.h.b16 %v667
    %v1410 = vunpack.c.l.b16 %v668
    %v1411 = vunpack.c.h.b16 %v668
    %v1412 = vunpack.c.l.b16 %v669
    %v1413 = vunpack.c.h.b16 %v669
    %v1414 = vunpack.c.l.b16 %v670
    %v1415 = vunpack.c.h.b16 %v670
    %v1416 = vunpack.c.l.b16 %v671
    %v1417 = vunpack.c.h.b16 %v671
    %v1418 = vunpack.c.l.b16 %v672
    %v1419 = vunpack.c.h.b16 %v672
    %v1420 = vunpack.c.l.b16 %v673
    %v1421 = vunpack.c.h.b16 %v673
    %v1422 = vunpack.c.l.b16 %v674
    %v1423 = vunpack.c.h.b16 %v674
    %v1424 = vunpack.c.l.b16 %v675
    %v1425 = vunpack.c.h.b16 %v675
    %v1426 = vunpack.c.l.b16 %v676
    %v1427 = vunpack.c.h.b16 %v676
    %v1428 = vunpack.c.l.b16 %v677
    %v1429 = vunpack.c.h.b16 %v677
    %v1430 = vunpack.c.l.b16 %v678
    %v1431 = vunpack.c.h.b16 %v678
    %v1432 = vunpack.c.l.b16 %v679
    %v1433 = vunpack.c.h.b16 %v679
    %v1434 = vunpack.c.l.b16 %v680
    %v1435 = vunpack.c.h.b16 %v680
    %v1436 = vunpack.c.l.b16 %v681
    %v1437 = vunpack.c.h.b16 %v681
    %v1438 = vunpack.c.l.b16 %v682
    %v1439 = vunpack.c.h.b16 %v682
    %v1440 = vunpack.c.l.b16 %v683
    %v1441 = vunpack.c.h.b16 %v683
    %v1442 = vunpack.c.l.b16 %v684
    %v1443 = vunpack.c.h.b16 %v684
    %v1444 = vunpack.c.l.b16 %v685
    %v1445 = vunpack.c.h.b16 %v685
    %v1446 = vunpack.c.l.b16 %v686
    %v1447 = vunpack.c.h.b16 %v686
    %v1448 = vunpack.c.l.b16 %v687
    %v1449 = vunpack.c.h.b16 %v687
    %v1450 = vunpack.c.l.b16 %v688
    %v1451 = vunpack.c.h.b16 %v688
    %v1452 = vunpack.c.l.b16 %v689
    %v1453 = vunpack.c.h.b16 %v689
    %v1454 = vunpack.c.l.b16 %v690
    %v1455 = vunpack.c.h.b16 %v690
    %v1456 = vunpack.c.l.b16 %v691
    %v1457 = vunpack.c.h.b16 %v691
    %v1458 = vunpack.c.l.b16 %v692
    %v1459 = vunpack.c.h.b16 %v692
    %v1460 = vunpack.c.l.b16 %v693
    %v1461 = vunpack.c.h.b16 %v693
    %v1462 = vunpack.c.l.b16 %v694
    %v1463 = vunpack.c.h.b16 %v694
    %v1464 = vunpack.c.l.b16 %v695
    %v1465 = vunpack.c.h.b16 %v695
    %v1466 = vunpack.c.l.b16 %v696
    %v1467 = vunpack.c.h.b16 %v696
    %v1468 = vunpack.c.l.b16 %v697
    %v1469 = vunpack.c.h.b16 %v697
    %v1470 = vunpack.c.l.b16 %v698
    %v1471 = vunpack.c.h.b16 %v698
    %v1472 = vunpack.c.l.b16 %v699
    %v1473 = vunpack.c.h.b16 %v699
    %v1474 = vunpack.c.l.b16 %v700
    %v1475 = vunpack.c.h.b16 %v700
    %v1476 = vunpack.c.l.b16 %v701
    %v1477 = vunpack.c.h.b16 %v701
    %v1478 = vunpack.c.l.b16 %v702
    %v1479 = vunpack.c.h.b16 %v702
    %v1480 = vunpack.c.l.b16 %v703
    %v1481 = vunpack.c.h.b16 %v703
    %v1482 = vunpack.c.l.b16 %v704
    %v1483 = vunpack.c.h.b16 %v704
    %v1484 = vunpack.c.l.b16 %v705
    %v1485 = vunpack.c.h.b16 %v705
    %v1486 = vunpack.c.l.b16 %v706
    %v1487 = vunpack.c.h.b16 %v706
    %v1488 = vunpack.c.l.b16 %v707
    %v1489 = vunpack.c.h.b16 %v707
    %v1490 = vunpack.c.l.b16 %v708
    %v1491 = vunpack.c.h.b16 %v708
    %v1492 = vunpack.c.l.b16 %v709
    %v1493 = vunpack.c.h.b16 %v709
    %v1494 = vunpack.c.l.b16 %v710
    %v1495 = vunpack.c.h.b16 %v710
    %v1496 = vunpack.c.l.b16 %v711
    %v1497 = vunpack.c.h.b16 %v711
    %v1498 = vunpack.c.l.b16 %v712
    %v1499 = vunpack.c.h.b16 %v712
    %v1500 = vunpack.c.l.b16 %v713
    %v1501 = vunpack.c.h.b16 %v713
    %v1502 = vunpack.c.l.b16 %v714
    %v1503 = vunpack.c.h.b16 %v714
    %v1504 = vunpack.c.l.b16 %v715
    %v1505 = vunpack.c.h.b16 %v715
    %v1506 = vpack.c.b16 %v998, %v994
    %v1507 = vpack.c.b16 %v999, %v995
    %v1508 = vpack.c.b16 %v1000, %v996
    %v1509 = vpack.c.b16 %v1001, %v997
    %v1510 = vpack.c.b16 %v1006, %v1002
    %v1511 = vpack.c.b16 %v1007, %v1003
    %v1512 = vpack.c.b16 %v1008, %v1004
    %v1513 = vpack.c.b16 %v1009, %v1005
    %v1514 = vpack.c.b16 %v1014, %v1010
    %v1515 = vpack.c.b16 %v1015, %v1011
    %v1516 = vpack.c.b16 %v1016, %v1012
    %v1517 = vpack.c.b16 %v1017, %v1013
    %v1518 = vpack.c.b16 %v1022, %v1018
    %v1519 = vpack.c.b16 %v1023, %v1019
    %v1520 = vpack.c.b16 %v1024, %v1020
    %v1521 = vpack.c.b16 %v1025, %v1021
    %v1522 = vpack.c.b16 %v1030, %v1026
    %v1523 = vpack.c.b16 %v1031, %v1027
    %v1524 = vpack.c.b16 %v1032, %v1028
    %v1525 = vpack.c.b16 %v1033, %v1029
    %v1526 = vpack.c.b16 %v1038, %v1034
    %v1527 = vpack.c.b16 %v1039, %v1035
    %v1528 = vpack.c.b16 %v1040, %v1036
    %v1529 = vpack.c.b16 %v1041, %v1037
    %v1530 = vpack.c.b16 %v1046, %v1042
    %v1531 = vpack.c.b16 %v1047, %v1043
    %v1532 = vpack.c.b16 %v1048, %v1044
    %v1533 = vpack.c.b16 %v1049, %v1045
    %v1534 = vpack.c.b16 %v1054, %v1050
    %v1535 = vpack.c.b16 %v1055, %v1051
    %v1536 = vpack.c.b16 %v1056, %v1052
    %v1537 = vpack.c.b16 %v1057, %v1053
    %v1538 = vpack.c.b16 %v1062, %v1058
    %v1539 = vpack.c.b16 %v1063, %v1059
    %v1540 = vpack.c.b16 %v1064, %v1060
    %v1541 = vpack.c.b16 %v1065, %v1061
    %v1542 = vpack.c.b16 %v1070, %v1066
    %v1543 = vpack.c.b16 %v1071, %v1067
    %v1544 = vpack.c.b16 %v1072, %v1068
    %v1545 = vpack.c.b16 %v1073, %v1069
    %v1546 = vpack.c.b16 %v1078, %v1074
    %v1547 = vpack.c.b16 %v1079, %v1075
    %v1548 = vpack.c.b16 %v1080, %v1076
    %v1549 = vpack.c.b16 %v1081, %v1077
    %v1550 = vpack.c.b16 %v1086, %v1082
    %v1551 = vpack.c.b16 %v1087, %v1083
    %v1552 = vpack.c.b16 %v1088, %v1084
    %v1553 = vpack.c.b16 %v1089, %v1085
    %v1554 = vpack.c.b16 %v1094, %v1090
    %v1555 = vpack.c.b16 %v1095, %v1091
    %v1556 = vpack.c.b16 %v1096, %v1092
    %v1557 = vpack.c.b16 %v1097, %v1093
    %v1558 = vpack.c.b16 %v1102, %v1098
    %v1559 = vpack.c.b16 %v1103, %v1099
    %v1560 = vpack.c.b16 %v1104, %v1100
    %v1561 = vpack.c.b16 %v1105, %v1101
    %v1562 = vpack.c.b16 %v1110, %v1106
    %v1563 = vpack.c.b16 %v1111, %v1107
    %v1564 = vpack.c.b16 %v1112, %v1108
    %v1565 = vpack.c.b16 %v1113, %v1109
    %v1566 = vpack.c.b16 %v1118, %v1114
    %v1567 = vpack.c.b16 %v1119, %v1115
    %v1568 = vpack.c.b16 %v1120, %v1116
    %v1569 = vpack.c.b16 %v1121, %v1117
    %v1570 = vpack.c.b16 %v1126, %v1122
    %v1571 = vpack.c.b16 %v1127, %v1123
    %v1572 = vpack.c.b16 %v1128, %v1124
    %v1573 = vpack.c.b16 %v1129, %v1125
    %v1574 = vpack.c.b16 %v1134, %v1130
    %v1575 = vpack.c.b16 %v1135, %v1131
    %v1576 = vpack.c.b16 %v1136, %v1132
    %v1577 = vpack.c.b16 %v1137, %v1133
    %v1578 = vpack.c.b16 %v1142, %v1138
    %v1579 = vpack.c.b16 %v1143, %v1139
    %v1580 = vpack.c.b16 %v1144, %v1140
    %v1581 = vpack.c.b16 %v1145, %v1141
    %v1582 = vpack.c.b16 %v1150, %v1146
    %v1583 = vpack.c.b16 %v1151, %v1147
    %v1584 = vpack.c.b16 %v1152, %v1148
    %v1585 = vpack.c.b16 %v1153, %v1149
    %v1586 = vpack.c.b16 %v1158, %v1154
    %v1587 = vpack.c.b16 %v1159, %v1155
    %v1588 = vpack.c.b16 %v1160, %v1156
    %v1589 = vpack.c.b16 %v1161, %v1157
    %v1590 = vpack.c.b16 %v1166, %v1162
    %v1591 = vpack.c.b16 %v1167, %v1163
    %v1592 = vpack.c.b16 %v1168, %v1164
    %v1593 = vpack.c.b16 %v1169, %v1165
    %v1594 = vpack.c.b16 %v1174, %v1170
    %v1595 = vpack.c.b16 %v1175, %v1171
    %v1596 = vpack.c.b16 %v1176, %v1172
    %v1597 = vpack.c.b16 %v1177, %v1173
    %v1598 = vpack.c.b16 %v1182, %v1178
    %v1599 = vpack.c.b16 %v1183, %v1179
    %v1600 = vpack.c.b16 %v1184, %v1180
    %v1601 = vpack.c.b16 %v1185, %v1181
    %v1602 = vpack.c.b16 %v1190, %v1186
    %v1603 = vpack.c.b16 %v1191, %v1187
    %v1604 = vpack.c.b16 %v1192, %v1188
    %v1605 = vpack.c.b16 %v1193, %v1189
    %v1606 = vpack.c.b16 %v1198, %v1194
    %v1607 = vpack.c.b16 %v1199, %v1195
    %v1608 = vpack.c.b16 %v1200, %v1196
    %v1609 = vpack.c.b16 %v1201, %v1197
    %v1610 = vpack.c.b16 %v1206, %v1202
    %v1611 = vpack.c.b16 %v1207, %v1203
    %v1612 = vpack.c.b16 %v1208, %v1204
    %v1613 = vpack.c.b16 %v1209, %v1205
    %v1614 = vpack.c.b16 %v1214, %v1210
    %v1615 = vpack.c.b16 %v1215, %v1211
    %v1616 = vpack.c.b16 %v1216, %v1212
    %v1617 = vpack.c.b16 %v1217, %v1213
    %v1618 = vpack.c.b16 %v1222, %v1218
    %v1619 = vpack.c.b16 %v1223, %v1219
    %v1620 = vpack.c.b16 %v1224, %v1220
    %v1621 = vpack.c.b16 %v1225, %v1221
    %v1622 = vpack.c.b16 %v1230, %v1226
    %v1623 = vpack.c.b16 %v1231, %v1227
    %v1624 = vpack.c.b16 %v1232, %v1228
    %v1625 = vpack.c.b16 %v1233, %v1229
    %v1626 = vpack.c.b16 %v1238, %v1234
    %v1627 = vpack.c.b16 %v1239, %v1235
    %v1628 = vpack.c.b16 %v1240, %v1236
    %v1629 = vpack.c.b16 %v1241, %v1237
    %v1630 = vpack.c.b16 %v1246, %v1242
    %v1631 = vpack.c.b16 %v1247, %v1243
    %v1632 = vpack.c.b16 %v1248, %v1244
    %v1633 = vpack.c.b16 %v1249, %v1245
    %v1634 = vpack.c.b16 %v1254, %v1250
    %v1635 = vpack.c.b16 %v1255, %v1251
    %v1636 = vpack.c.b16 %v1256, %v1252
    %v1637 = vpack.c.b16 %v1257, %v1253
    %v1638 = vpack.c.b16 %v1262, %v1258
    %v1639 = vpack.c.b16 %v1263, %v1259
    %v1640 = vpack.c.b16 %v1264, %v1260
    %v1641 = vpack.c.b16 %v1265, %v1261
    %v1642 = vpack.c.b16 %v1270, %v1266
    %v1643 = vpack.c.b16 %v1271, %v1267
    %v1644 = vpack.c.b16 %v1272, %v1268
    %v1645 = vpack.c.b16 %v1273, %v1269
    %v1646 = vpack.c.b16 %v1278, %v1274
    %v1647 = vpack.c.b16 %v1279, %v1275
    %v1648 = vpack.c.b16 %v1280, %v1276
    %v1649 = vpack.c.b16 %v1281, %v1277
    %v1650 = vpack.c.b16 %v1286, %v1282
    %v1651 = vpack.c.b16 %v1287, %v1283
    %v1652 = vpack.c.b16 %v1288, %v1284
    %v1653 = vpack.c.b16 %v1289, %v1285
    %v1654 = vpack.c.b16 %v1294, %v1290
    %v1655 = vpack.c.b16 %v1295, %v1291
    %v1656 = vpack.c.b16 %v1296, %v1292
    %v1657 = vpack.c.b16 %v1297, %v1293
    %v1658 = vpack.c.b16 %v1302, %v1298
    %v1659 = vpack.c.b16 %v1303, %v1299
    %v1660 = vpack.c.b16 %v1304, %v1300
    %v1661 = vpack.c.b16 %v1305, %v1301
    %v1662 = vpack.c.b16 %v1310, %v1306
    %v1663 = vpack.c.b16 %v1311, %v1307
    %v1664 = vpack.c.b16 %v1312, %v1308
    %v1665 = vpack.c.b16 %v1313, %v1309
    %v1666 = vpack.c.b16 %v1318, %v1314
    %v1667 = vpack.c.b16 %v1319, %v1315
    %v1668 = vpack.c.b16 %v1320, %v1316
    %v1669 = vpack.c.b16 %v1321, %v1317
    %v1670 = vpack.c.b16 %v1326, %v1322
    %v1671 = vpack.c.b16 %v1327, %v1323
    %v1672 = vpack.c.b16 %v1328, %v1324
    %v1673 = vpack.c.b16 %v1329, %v1325
    %v1674 = vpack.c.b16 %v1334, %v1330
    %v1675 = vpack.c.b16 %v1335, %v1331
    %v1676 = vpack.c.b16 %v1336, %v1332
    %v1677 = vpack.c.b16 %v1337, %v1333
    %v1678 = vpack.c.b16 %v1342, %v1338
    %v1679 = vpack.c.b16 %v1343, %v1339
    %v1680 = vpack.c.b16 %v1344, %v1340
    %v1681 = vpack.c.b16 %v1345, %v1341
    %v1682 = vpack.c.b16 %v1350, %v1346
    %v1683 = vpack.c.b16 %v1351, %v1347
    %v1684 = vpack.c.b16 %v1352, %v1348
    %v1685 = vpack.c.b16 %v1353, %v1349
    %v1686 = vpack.c.b16 %v1358, %v1354
    %v1687 = vpack.c.b16 %v1359, %v1355
    %v1688 = vpack.c.b16 %v1360, %v1356
    %v1689 = vpack.c.b16 %v1361, %v1357
    %v1690 = vpack.c.b16 %v1366, %v1362
    %v1691 = vpack.c.b16 %v1367, %v1363
    %v1692 = vpack.c.b16 %v1368, %v1364
    %v1693 = vpack.c.b16 %v1369, %v1365
    %v1694 = vpack.c.b16 %v1374, %v1370
    %v1695 = vpack.c.b16 %v1375, %v1371
    %v1696 = vpack.c.b16 %v1376, %v1372
    %v1697 = vpack.c.b16 %v1377, %v1373
    %v1698 = vpack.c.b16 %v1382, %v1378
    %v1699 = vpack.c.b16 %v1383, %v1379
    %v1700 = vpack.c.b16 %v1384, %v1380
    %v1701 = vpack.c.b16 %v1385, %v1381
    %v1702 = vpack.c.b16 %v1390, %v1386
    %v1703 = vpack.c.b16 %v1391, %v1387
    %v1704 = vpack.c.b16 %v1392, %v1388
    %v1705 = vpack.c.b16 %v1393, %v1389
    %v1706 = vpack.c.b16 %v1398, %v1394
    %v1707 = vpack.c.b16 %v1399, %v1395
    %v1708 = vpack.c.b16 %v1400, %v1396
    %v1709 = vpack.c.b16 %v1401, %v1397
    %v1710 = vpack.c.b16 %v1406, %v1402
    %v1711 = vpack.c.b16 %v1407, %v1403
    %v1712 = vpack.c.b16 %v1408, %v1404
    %v1713 = vpack.c.b16 %v1409, %v1405
    %v1714 = vpack.c.b16 %v1414, %v1410
    %v1715 = vpack.c.b16 %v1415, %v1411
    %v1716 = vpack.c.b16 %v1416, %v1412
    %v1717 = vpack.c.b16 %v1417, %v1413
    %v1718 = vpack.c.b16 %v1422, %v1418
    %v1719 = vpack.c.b16 %v1423, %v1419
    %v1720 = vpack.c.b16 %v1424, %v1420
    %v1721 = vpack.c.b16 %v1425, %v1421
    %v1722 = vpack.c.b16 %v1430, %v1426
    %v1723 = vpack.c.b16 %v1431, %v1427
    %v1724 = vpack.c.b16 %v1432, %v1428
    %v1725 = vpack.c.b16 %v1433, %v1429
    %v1726 = vpack.c.b16 %v1438, %v1434
    %v1727 = vpack.c.b16 %v1439, %v1435
    %v1728 = vpack.c.b16 %v1440, %v1436
    %v1729 = vpack.c.b16 %v1441, %v1437
    %v1730 = vpack.c.b16 %v1446, %v1442
    %v1731 = vpack.c.b16 %v1447, %v1443
    %v1732 = vpack.c.b16 %v1448, %v1444
    %v1733 = vpack.c.b16 %v1449, %v1445
    %v1734 = vpack.c.b16 %v1454, %v1450
    %v1735 = vpack.c.b16 %v1455, %v1451
    %v1736 = vpack.c.b16 %v1456, %v1452
    %v1737 = vpack.c.b16 %v1457, %v1453
    %v1738 = vpack.c.b16 %v1462, %v1458
    %v1739 = vpack.c.b16 %v1463, %v1459
    %v1740 = vpack.c.b16 %v1464, %v1460
    %v1741 = vpack.c.b16 %v1465, %v1461
    %v1742 = vpack.c.b16 %v1470, %v1466
    %v1743 = vpack.c.b16 %v1471, %v1467
    %v1744 = vpack.c.b16 %v1472, %v1468
    %v1745 = vpack.c.b16 %v1473, %v1469
    %v1746 = vpack.c.b16 %v1478, %v1474
    %v1747 = vpack.c.b16 %v1479, %v1475
    %v1748 = vpack.c.b16 %v1480, %v1476
    %v1749 = vpack.c.b16 %v1481, %v1477
    %v1750 = vpack.c.b16 %v1486, %v1482
    %v1751 = vpack.c.b16 %v1487, %v1483
    %v1752 = vpack.c.b16 %v1488, %v1484
    %v1753 = vpack.c.b16 %v1489, %v1485
    %v1754 = vpack.c.b16 %v1494, %v1490
    %v1755 = vpack.c.b16 %v1495, %v1491
    %v1756 = vpack.c.b16 %v1496, %v1492
    %v1757 = vpack.c.b16 %v1497, %v1493
    %v1758 = vpack.c.b16 %v1502, %v1498
    %v1759 = vpack.c.b16 %v1503, %v1499
    %v1760 = vpack.c.b16 %v1504, %v1500
    %v1761 = vpack.c.b16 %v1505, %v1501
    %2018 = vmatprep.subr.bf16.mxu0 %v1535
    %2019 = vmatpush1.bf16.msra.mxu0 %v1534
    %2020 = vmatprep.subr.bf16.mxu0 %v1531
    %2021 = vmatpush1.bf16.msra.mxu0 %v1530
    %2022 = vmatprep.subr.bf16.mxu0 %v1527
    %2023 = vmatpush1.bf16.msra.mxu0 %v1526
    %2024 = vmatprep.subr.bf16.mxu0 %v1523
    %2025 = vmatpush1.bf16.msra.mxu0 %v1522
    %2026 = vmatprep.subr.bf16.mxu0 %v1519
    %2027 = vmatpush1.bf16.msra.mxu0 %v1518
    %2028 = vmatprep.subr.bf16.mxu0 %v1515
    %2029 = vmatpush1.bf16.msra.mxu0 %v1514
    %2030 = vmatprep.subr.bf16.mxu0 %v1511
    %2031 = vmatpush1.bf16.msra.mxu0 %v1510
    %2032 = vmatprep.subr.bf16.mxu0 %v1507
    %2033 = vmatpush1.bf16.msra.mxu0 %v1506
    %2034 = vmatprep.subr.bf16.mxu0 %v1567
    %2035 = vmatpush2.bf16.msra.mxu0 %v1566
    %2036 = vmatprep.subr.bf16.mxu0 %v1563
    %2037 = vmatpush2.bf16.msra.mxu0 %v1562
    %2038 = vmatprep.subr.bf16.mxu0 %v1559
    %2039 = vmatpush2.bf16.msra.mxu0 %v1558
    %2040 = vmatprep.subr.bf16.mxu0 %v1555
    %2041 = vmatpush2.bf16.msra.mxu0 %v1554
    %2042 = vmatprep.subr.bf16.mxu0 %v1551
    %2043 = vmatpush2.bf16.msra.mxu0 %v1550
    %2044 = vmatprep.subr.bf16.mxu0 %v1547
    %2045 = vmatpush2.bf16.msra.mxu0 %v1546
    %2046 = vmatprep.subr.bf16.mxu0 %v1543
    %2047 = vmatpush2.bf16.msra.mxu0 %v1542
    %2048 = vmatprep.subr.bf16.mxu0 %v1539
    %2049 = vmatpush2.bf16.msra.mxu0 %v1538
    %2050 = vmatprep.mubr.bf16.mxu0 %v453
    %2051 = vmatmul.mubr.bf16.gmra.mxu0 %v452
    %v2052 = vpop.f32.mrf.mxu0
    %v2053 = vadd.f32 %v721, %v2052
    %v2054 = vpop.f32.mrf.mxu0
    %v2055 = vadd.f32 %v725, %v2054
    %v2056 = vpop.f32.mrf.mxu0
    %v2057 = vadd.f32 %v721, %v2056
    %v2058 = vpop.f32.mrf.mxu0
    %v2059 = vadd.f32 %v725, %v2058
    %2060 = vdwg.mxu0
    %2061 = vmatprep.subr.bf16.mxu0 %v1599
    %2062 = vmatpush1.bf16.msra.mxu0 %v1598
    %2063 = vmatprep.subr.bf16.mxu0 %v1595
    %2064 = vmatpush1.bf16.msra.mxu0 %v1594
    %2065 = vmatprep.subr.bf16.mxu0 %v1591
    %2066 = vmatpush1.bf16.msra.mxu0 %v1590
    %2067 = vmatprep.subr.bf16.mxu0 %v1587
    %2068 = vmatpush1.bf16.msra.mxu0 %v1586
    %2069 = vmatprep.subr.bf16.mxu0 %v1583
    %2070 = vmatpush1.bf16.msra.mxu0 %v1582
    %2071 = vmatprep.subr.bf16.mxu0 %v1579
    %2072 = vmatpush1.bf16.msra.mxu0 %v1578
    %2073 = vmatprep.subr.bf16.mxu0 %v1575
    %2074 = vmatpush1.bf16.msra.mxu0 %v1574
    %2075 = vmatprep.subr.bf16.mxu0 %v1571
    %2076 = vmatpush1.bf16.msra.mxu0 %v1570
    %2077 = vmatprep.subr.bf16.mxu0 %v1631
    %2078 = vmatpush2.bf16.msra.mxu0 %v1630
    %2079 = vmatprep.subr.bf16.mxu0 %v1627
    %2080 = vmatpush2.bf16.msra.mxu0 %v1626
    %2081 = vmatprep.subr.bf16.mxu0 %v1623
    %2082 = vmatpush2.bf16.msra.mxu0 %v1622
    %2083 = vmatprep.subr.bf16.mxu0 %v1619
    %2084 = vmatpush2.bf16.msra.mxu0 %v1618
    %2085 = vmatprep.subr.bf16.mxu0 %v1615
    %2086 = vmatpush2.bf16.msra.mxu0 %v1614
    %2087 = vmatprep.subr.bf16.mxu0 %v1611
    %2088 = vmatpush2.bf16.msra.mxu0 %v1610
    %2089 = vmatprep.subr.bf16.mxu0 %v1607
    %2090 = vmatpush2.bf16.msra.mxu0 %v1606
    %2091 = vmatprep.subr.bf16.mxu0 %v1603
    %2092 = vmatpush2.bf16.msra.mxu0 %v1602
    %2093 = vmatprep.mubr.bf16.mxu0 %v455
    %2094 = vmatmul.mubr.bf16.gmra.mxu0 %v454
    %v2095 = vpop.f32.mrf.mxu0
    %v2096 = vadd.f32 %v2053, %v2095
    %v2097 = vpop.f32.mrf.mxu0
    %v2098 = vadd.f32 %v2055, %v2097
    %v2099 = vpop.f32.mrf.mxu0
    %v2100 = vadd.f32 %v2057, %v2099
    %v2101 = vpop.f32.mrf.mxu0
    %v2102 = vadd.f32 %v2059, %v2101
    %2103 = vdwg.mxu0
    %2104 = vmatprep.subr.bf16.mxu0 %v1663
    %2105 = vmatpush1.bf16.msra.mxu0 %v1662
    %2106 = vmatprep.subr.bf16.mxu0 %v1659
    %2107 = vmatpush1.bf16.msra.mxu0 %v1658
    %2108 = vmatprep.subr.bf16.mxu0 %v1655
    %2109 = vmatpush1.bf16.msra.mxu0 %v1654
    %2110 = vmatprep.subr.bf16.mxu0 %v1651
    %2111 = vmatpush1.bf16.msra.mxu0 %v1650
    %2112 = vmatprep.subr.bf16.mxu0 %v1647
    %2113 = vmatpush1.bf16.msra.mxu0 %v1646
    %2114 = vmatprep.subr.bf16.mxu0 %v1643
    %2115 = vmatpush1.bf16.msra.mxu0 %v1642
    %2116 = vmatprep.subr.bf16.mxu0 %v1639
    %2117 = vmatpush1.bf16.msra.mxu0 %v1638
    %2118 = vmatprep.subr.bf16.mxu0 %v1635
    %2119 = vmatpush1.bf16.msra.mxu0 %v1634
    %2120 = vmatprep.subr.bf16.mxu0 %v1695
    %2121 = vmatpush2.bf16.msra.mxu0 %v1694
    %2122 = vmatprep.subr.bf16.mxu0 %v1691
    %2123 = vmatpush2.bf16.msra.mxu0 %v1690
    %2124 = vmatprep.subr.bf16.mxu0 %v1687
    %2125 = vmatpush2.bf16.msra.mxu0 %v1686
    %2126 = vmatprep.subr.bf16.mxu0 %v1683
    %2127 = vmatpush2.bf16.msra.mxu0 %v1682
    %2128 = vmatprep.subr.bf16.mxu0 %v1679
    %2129 = vmatpush2.bf16.msra.mxu0 %v1678
    %2130 = vmatprep.subr.bf16.mxu0 %v1675
    %2131 = vmatpush2.bf16.msra.mxu0 %v1674
    %2132 = vmatprep.subr.bf16.mxu0 %v1671
    %2133 = vmatpush2.bf16.msra.mxu0 %v1670
    %2134 = vmatprep.subr.bf16.mxu0 %v1667
    %2135 = vmatpush2.bf16.msra.mxu0 %v1666
    %2136 = vmatprep.mubr.bf16.mxu0 %v457
    %2137 = vmatmul.mubr.bf16.gmra.mxu0 %v456
    %v2138 = vpop.f32.mrf.mxu0
    %v2139 = vadd.f32 %v2096, %v2138
    %v2140 = vpop.f32.mrf.mxu0
    %v2141 = vadd.f32 %v2098, %v2140
    %v2142 = vpop.f32.mrf.mxu0
    %v2143 = vadd.f32 %v2100, %v2142
    %v2144 = vpop.f32.mrf.mxu0
    %v2145 = vadd.f32 %v2102, %v2144
    %2146 = vdwg.mxu0
    %2147 = vmatprep.subr.bf16.mxu0 %v1727
    %2148 = vmatpush1.bf16.msra.mxu0 %v1726
    %2149 = vmatprep.subr.bf16.mxu0 %v1723
    %2150 = vmatpush1.bf16.msra.mxu0 %v1722
    %2151 = vmatprep.subr.bf16.mxu0 %v1719
    %2152 = vmatpush1.bf16.msra.mxu0 %v1718
    %2153 = vmatprep.subr.bf16.mxu0 %v1715
    %2154 = vmatpush1.bf16.msra.mxu0 %v1714
    %2155 = vmatprep.subr.bf16.mxu0 %v1711
    %2156 = vmatpush1.bf16.msra.mxu0 %v1710
    %2157 = vmatprep.subr.bf16.mxu0 %v1707
    %2158 = vmatpush1.bf16.msra.mxu0 %v1706
    %2159 = vmatprep.subr.bf16.mxu0 %v1703
    %2160 = vmatpush1.bf16.msra.mxu0 %v1702
    %2161 = vmatprep.subr.bf16.mxu0 %v1699
    %2162 = vmatpush1.bf16.msra.mxu0 %v1698
    %2163 = vmatprep.subr.bf16.mxu0 %v1759
    %2164 = vmatpush2.bf16.msra.mxu0 %v1758
    %2165 = vmatprep.subr.bf16.mxu0 %v1755
    %2166 = vmatpush2.bf16.msra.mxu0 %v1754
    %2167 = vmatprep.subr.bf16.mxu0 %v1751
    %2168 = vmatpush2.bf16.msra.mxu0 %v1750
    %2169 = vmatprep.subr.bf16.mxu0 %v1747
    %2170 = vmatpush2.bf16.msra.mxu0 %v1746
    %2171 = vmatprep.subr.bf16.mxu0 %v1743
    %2172 = vmatpush2.bf16.msra.mxu0 %v1742
    %2173 = vmatprep.subr.bf16.mxu0 %v1739
    %2174 = vmatpush2.bf16.msra.mxu0 %v1738
    %2175 = vmatprep.subr.bf16.mxu0 %v1735
    %2176 = vmatpush2.bf16.msra.mxu0 %v1734
    %2177 = vmatprep.subr.bf16.mxu0 %v1731
    %2178 = vmatpush2.bf16.msra.mxu0 %v1730
    %2179 = vmatprep.mubr.bf16.mxu0 %v459
    %2180 = vmatmul.mubr.bf16.gmra.mxu0 %v458
    %v2181 = vpop.f32.mrf.mxu0
    %v2182 = vadd.f32 %v2139, %v2181
    %v2183 = vpop.f32.mrf.mxu0
    %v2184 = vadd.f32 %v2141, %v2183
    %v2185 = vpop.f32.mrf.mxu0
    %v2186 = vadd.f32 %v2143, %v2185
    %v2187 = vpop.f32.mrf.mxu0
    %v2188 = vadd.f32 %v2145, %v2187
    %2189 = vdwg.mxu0
    %2190 = vmatprep.subr.bf16.mxu0 %v1537
    %2191 = vmatpush1.bf16.msra.mxu0 %v1536
    %2192 = vmatprep.subr.bf16.mxu0 %v1533
    %2193 = vmatpush1.bf16.msra.mxu0 %v1532
    %2194 = vmatprep.subr.bf16.mxu0 %v1529
    %2195 = vmatpush1.bf16.msra.mxu0 %v1528
    %2196 = vmatprep.subr.bf16.mxu0 %v1525
    %2197 = vmatpush1.bf16.msra.mxu0 %v1524
    %2198 = vmatprep.subr.bf16.mxu0 %v1521
    %2199 = vmatpush1.bf16.msra.mxu0 %v1520
    %2200 = vmatprep.subr.bf16.mxu0 %v1517
    %2201 = vmatpush1.bf16.msra.mxu0 %v1516
    %2202 = vmatprep.subr.bf16.mxu0 %v1513
    %2203 = vmatpush1.bf16.msra.mxu0 %v1512
    %2204 = vmatprep.subr.bf16.mxu0 %v1509
    %2205 = vmatpush1.bf16.msra.mxu0 %v1508
    %2206 = vmatprep.subr.bf16.mxu0 %v1569
    %2207 = vmatpush2.bf16.msra.mxu0 %v1568
    %2208 = vmatprep.subr.bf16.mxu0 %v1565
    %2209 = vmatpush2.bf16.msra.mxu0 %v1564
    %2210 = vmatprep.subr.bf16.mxu0 %v1561
    %2211 = vmatpush2.bf16.msra.mxu0 %v1560
    %2212 = vmatprep.subr.bf16.mxu0 %v1557
    %2213 = vmatpush2.bf16.msra.mxu0 %v1556
    %2214 = vmatprep.subr.bf16.mxu0 %v1553
    %2215 = vmatpush2.bf16.msra.mxu0 %v1552
    %2216 = vmatprep.subr.bf16.mxu0 %v1549
    %2217 = vmatpush2.bf16.msra.mxu0 %v1548
    %2218 = vmatprep.subr.bf16.mxu0 %v1545
    %2219 = vmatpush2.bf16.msra.mxu0 %v1544
    %2220 = vmatprep.subr.bf16.mxu0 %v1541
    %2221 = vmatpush2.bf16.msra.mxu0 %v1540
    %2222 = vmatprep.mubr.bf16.mxu0 %v453
    %2223 = vmatmul.mubr.bf16.gmra.mxu0 %v452
    %v2224 = vpop.f32.mrf.mxu0
    %v2225 = vadd.f32 %v729, %v2224
    %v2226 = vpop.f32.mrf.mxu0
    %v2227 = vadd.f32 %v733, %v2226
    %v2228 = vpop.f32.mrf.mxu0
    %v2229 = vadd.f32 %v729, %v2228
    %v2230 = vpop.f32.mrf.mxu0
    %v2231 = vadd.f32 %v733, %v2230
    %2232 = vdwg.mxu0
    %2233 = vmatprep.subr.bf16.mxu0 %v1601
    %2234 = vmatpush1.bf16.msra.mxu0 %v1600
    %2235 = vmatprep.subr.bf16.mxu0 %v1597
    %2236 = vmatpush1.bf16.msra.mxu0 %v1596
    %2237 = vmatprep.subr.bf16.mxu0 %v1593
    %2238 = vmatpush1.bf16.msra.mxu0 %v1592
    %2239 = vmatprep.subr.bf16.mxu0 %v1589
    %2240 = vmatpush1.bf16.msra.mxu0 %v1588
    %2241 = vmatprep.subr.bf16.mxu0 %v1585
    %2242 = vmatpush1.bf16.msra.mxu0 %v1584
    %2243 = vmatprep.subr.bf16.mxu0 %v1581
    %2244 = vmatpush1.bf16.msra.mxu0 %v1580
    %2245 = vmatprep.subr.bf16.mxu0 %v1577
    %2246 = vmatpush1.bf16.msra.mxu0 %v1576
    %2247 = vmatprep.subr.bf16.mxu0 %v1573
    %2248 = vmatpush1.bf16.msra.mxu0 %v1572
    %2249 = vmatprep.subr.bf16.mxu0 %v1633
    %2250 = vmatpush2.bf16.msra.mxu0 %v1632
    %2251 = vmatprep.subr.bf16.mxu0 %v1629
    %2252 = vmatpush2.bf16.msra.mxu0 %v1628
    %2253 = vmatprep.subr.bf16.mxu0 %v1625
    %2254 = vmatpush2.bf16.msra.mxu0 %v1624
    %2255 = vmatprep.subr.bf16.mxu0 %v1621
    %2256 = vmatpush2.bf16.msra.mxu0 %v1620
    %2257 = vmatprep.subr.bf16.mxu0 %v1617
    %2258 = vmatpush2.bf16.msra.mxu0 %v1616
    %2259 = vmatprep.subr.bf16.mxu0 %v1613
    %2260 = vmatpush2.bf16.msra.mxu0 %v1612
    %2261 = vmatprep.subr.bf16.mxu0 %v1609
    %2262 = vmatpush2.bf16.msra.mxu0 %v1608
    %2263 = vmatprep.subr.bf16.mxu0 %v1605
    %2264 = vmatpush2.bf16.msra.mxu0 %v1604
    %2265 = vmatprep.mubr.bf16.mxu0 %v455
    %2266 = vmatmul.mubr.bf16.gmra.mxu0 %v454
    %v2267 = vpop.f32.mrf.mxu0
    %v2268 = vadd.f32 %v2225, %v2267
    %v2269 = vpop.f32.mrf.mxu0
    %v2270 = vadd.f32 %v2227, %v2269
    %v2271 = vpop.f32.mrf.mxu0
    %v2272 = vadd.f32 %v2229, %v2271
    %v2273 = vpop.f32.mrf.mxu0
    %v2274 = vadd.f32 %v2231, %v2273
    %2275 = vdwg.mxu0
    %2276 = vmatprep.subr.bf16.mxu0 %v1665
    %2277 = vmatpush1.bf16.msra.mxu0 %v1664
    %2278 = vmatprep.subr.bf16.mxu0 %v1661
    %2279 = vmatpush1.bf16.msra.mxu0 %v1660
    %2280 = vmatprep.subr.bf16.mxu0 %v1657
    %2281 = vmatpush1.bf16.msra.mxu0 %v1656
    %2282 = vmatprep.subr.bf16.mxu0 %v1653
    %2283 = vmatpush1.bf16.msra.mxu0 %v1652
    %2284 = vmatprep.subr.bf16.mxu0 %v1649
    %2285 = vmatpush1.bf16.msra.mxu0 %v1648
    %2286 = vmatprep.subr.bf16.mxu0 %v1645
    %2287 = vmatpush1.bf16.msra.mxu0 %v1644
    %2288 = vmatprep.subr.bf16.mxu0 %v1641
    %2289 = vmatpush1.bf16.msra.mxu0 %v1640
    %2290 = vmatprep.subr.bf16.mxu0 %v1637
    %2291 = vmatpush1.bf16.msra.mxu0 %v1636
    %2292 = vmatprep.subr.bf16.mxu0 %v1697
    %2293 = vmatpush2.bf16.msra.mxu0 %v1696
    %2294 = vmatprep.subr.bf16.mxu0 %v1693
    %2295 = vmatpush2.bf16.msra.mxu0 %v1692
    %2296 = vmatprep.subr.bf16.mxu0 %v1689
    %2297 = vmatpush2.bf16.msra.mxu0 %v1688
    %2298 = vmatprep.subr.bf16.mxu0 %v1685
    %2299 = vmatpush2.bf16.msra.mxu0 %v1684
    %2300 = vmatprep.subr.bf16.mxu0 %v1681
    %2301 = vmatpush2.bf16.msra.mxu0 %v1680
    %2302 = vmatprep.subr.bf16.mxu0 %v1677
    %2303 = vmatpush2.bf16.msra.mxu0 %v1676
    %2304 = vmatprep.subr.bf16.mxu0 %v1673
    %2305 = vmatpush2.bf16.msra.mxu0 %v1672
    %2306 = vmatprep.subr.bf16.mxu0 %v1669
    %2307 = vmatpush2.bf16.msra.mxu0 %v1668
    %2308 = vmatprep.mubr.bf16.mxu0 %v457
    %2309 = vmatmul.mubr.bf16.gmra.mxu0 %v456
    %v2310 = vpop.f32.mrf.mxu0
    %v2311 = vadd.f32 %v2268, %v2310
    %v2312 = vpop.f32.mrf.mxu0
    %v2313 = vadd.f32 %v2270, %v2312
    %v2314 = vpop.f32.mrf.mxu0
    %v2315 = vadd.f32 %v2272, %v2314
    %v2316 = vpop.f32.mrf.mxu0
    %v2317 = vadd.f32 %v2274, %v2316
    %2318 = vdwg.mxu0
    %2319 = vmatprep.subr.bf16.mxu0 %v1729
    %2320 = vmatpush1.bf16.msra.mxu0 %v1728
    %2321 = vmatprep.subr.bf16.mxu0 %v1725
    %2322 = vmatpush1.bf16.msra.mxu0 %v1724
    %2323 = vmatprep.subr.bf16.mxu0 %v1721
    %2324 = vmatpush1.bf16.msra.mxu0 %v1720
    %2325 = vmatprep.subr.bf16.mxu0 %v1717
    %2326 = vmatpush1.bf16.msra.mxu0 %v1716
    %2327 = vmatprep.subr.bf16.mxu0 %v1713
    %2328 = vmatpush1.bf16.msra.mxu0 %v1712
    %2329 = vmatprep.subr.bf16.mxu0 %v1709
    %2330 = vmatpush1.bf16.msra.mxu0 %v1708
    %2331 = vmatprep.subr.bf16.mxu0 %v1705
    %2332 = vmatpush1.bf16.msra.mxu0 %v1704
    %2333 = vmatprep.subr.bf16.mxu0 %v1701
    %2334 = vmatpush1.bf16.msra.mxu0 %v1700
    %2335 = vmatprep.subr.bf16.mxu0 %v1761
    %2336 = vmatpush2.bf16.msra.mxu0 %v1760
    %2337 = vmatprep.subr.bf16.mxu0 %v1757
    %2338 = vmatpush2.bf16.msra.mxu0 %v1756
    %2339 = vmatprep.subr.bf16.mxu0 %v1753
    %2340 = vmatpush2.bf16.msra.mxu0 %v1752
    %2341 = vmatprep.subr.bf16.mxu0 %v1749
    %2342 = vmatpush2.bf16.msra.mxu0 %v1748
    %2343 = vmatprep.subr.bf16.mxu0 %v1745
    %2344 = vmatpush2.bf16.msra.mxu0 %v1744
    %2345 = vmatprep.subr.bf16.mxu0 %v1741
    %2346 = vmatpush2.bf16.msra.mxu0 %v1740
    %2347 = vmatprep.subr.bf16.mxu0 %v1737
    %2348 = vmatpush2.bf16.msra.mxu0 %v1736
    %2349 = vmatprep.subr.bf16.mxu0 %v1733
    %2350 = vmatpush2.bf16.msra.mxu0 %v1732
    %2351 = vmatprep.mubr.bf16.mxu0 %v459
    %2352 = vmatmul.mubr.bf16.gmra.mxu0 %v458
    %v2353 = vpop.f32.mrf.mxu0
    %v2354 = vadd.f32 %v2311, %v2353
    %v2355 = vpop.f32.mrf.mxu0
    %v2356 = vadd.f32 %v2313, %v2355
    %v2357 = vpop.f32.mrf.mxu0
    %v2358 = vadd.f32 %v2315, %v2357
    %v2359 = vpop.f32.mrf.mxu0
    %v2360 = vadd.f32 %v2317, %v2359
    %2361 = vdwg.mxu0
    %v2362 = vpack.c.bf16 %v2186, %v2182
    %v2363 = vpack.c.bf16 %v2188, %v2184
    %v2364 = vpack.c.bf16 %v2358, %v2354
    %v2365 = vpack.c.bf16 %v2360, %v2356
    %v2366 = vmul.bf16 %v2362, 1009007652
    %v2367 = vmul.bf16 %v2363, 1009007652
    %v2368 = vmul.bf16 %v2364, 1009007652
    %v2369 = vmul.bf16 %v2365, 1009007652
    %v2370 = vmax.bf16 %v2362, %v2366
    %v2371 = vmax.bf16 %v2363, %v2367
    %v2372 = vmax.bf16 %v2364, %v2368
    %v2373 = vmax.bf16 %v2365, %v2369
    %v2374 = vld [vmem:[#allocation10] sm:$0xff]
    %v2375 = vld [vmem:[#allocation10 + $0x8] sm:$0xff]
    %v2376 = vld [vmem:[#allocation10 + $0x10] sm:$0xff]
    %v2377 = vld [vmem:[#allocation10 + $0x18] sm:$0xff]
    %v2378 = vld [vmem:[#allocation10 + $0x20] sm:$0xff]
    %v2379 = vld [vmem:[#allocation10 + $0x28] sm:$0xff]
    %v2380 = vld [vmem:[#allocation10 + $0x30] sm:$0xff]
    %v2381 = vld [vmem:[#allocation10 + $0x38] sm:$0xff]
    %v2382 = vld [vmem:[#allocation10 + $0x40] sm:$0xff]
    %v2383 = vld [vmem:[#allocation10 + $0x48] sm:$0xff]
    %v2384 = vld [vmem:[#allocation10 + $0x50] sm:$0xff]
    %v2385 = vld [vmem:[#allocation10 + $0x58] sm:$0xff]
    %v2386 = vld [vmem:[#allocation10 + $0x60] sm:$0xff]
    %v2387 = vld [vmem:[#allocation10 + $0x68] sm:$0xff]
    %v2388 = vld [vmem:[#allocation10 + $0x70] sm:$0xff]
    %v2389 = vld [vmem:[#allocation10 + $0x78] sm:$0xff]
    %v2390 = vld [vmem:[#allocation10 + $0x80] sm:$0xff]
    %v2391 = vld [vmem:[#allocation10 + $0x88] sm:$0xff]
    %v2392 = vld [vmem:[#allocation10 + $0x90] sm:$0xff]
    %v2393 = vld [vmem:[#allocation10 + $0x98] sm:$0xff]
    %v2394 = vld [vmem:[#allocation10 + $0xa0] sm:$0xff]
    %v2395 = vld [vmem:[#allocation10 + $0xa8] sm:$0xff]
    %v2396 = vld [vmem:[#allocation10 + $0xb0] sm:$0xff]
    %v2397 = vld [vmem:[#allocation10 + $0xb8] sm:$0xff]
    %v2398 = vld [vmem:[#allocation10 + $0xc0] sm:$0xff]
    %v2399 = vld [vmem:[#allocation10 + $0xc8] sm:$0xff]
    %v2400 = vld [vmem:[#allocation10 + $0xd0] sm:$0xff]
    %v2401 = vld [vmem:[#allocation10 + $0xd8] sm:$0xff]
    %v2402 = vld [vmem:[#allocation10 + $0xe0] sm:$0xff]
    %v2403 = vld [vmem:[#allocation10 + $0xe8] sm:$0xff]
    %v2404 = vld [vmem:[#allocation10 + $0xf0] sm:$0xff]
    %v2405 = vld [vmem:[#allocation10 + $0xf8] sm:$0xff]
    %v2406 = vld [vmem:[#allocation10 + $0x100] sm:$0xff]
    %v2407 = vld [vmem:[#allocation10 + $0x108] sm:$0xff]
    %v2408 = vld [vmem:[#allocation10 + $0x110] sm:$0xff]
    %v2409 = vld [vmem:[#allocation10 + $0x118] sm:$0xff]
    %v2410 = vld [vmem:[#allocation10 + $0x120] sm:$0xff]
    %v2411 = vld [vmem:[#allocation10 + $0x128] sm:$0xff]
    %v2412 = vld [vmem:[#allocation10 + $0x130] sm:$0xff]
    %v2413 = vld [vmem:[#allocation10 + $0x138] sm:$0xff]
    %v2414 = vld [vmem:[#allocation10 + $0x140] sm:$0xff]
    %v2415 = vld [vmem:[#allocation10 + $0x148] sm:$0xff]
    %v2416 = vld [vmem:[#allocation10 + $0x150] sm:$0xff]
    %v2417 = vld [vmem:[#allocation10 + $0x158] sm:$0xff]
    %v2418 = vld [vmem:[#allocation10 + $0x160] sm:$0xff]
    %v2419 = vld [vmem:[#allocation10 + $0x168] sm:$0xff]
    %v2420 = vld [vmem:[#allocation10 + $0x170] sm:$0xff]
    %v2421 = vld [vmem:[#allocation10 + $0x178] sm:$0xff]
    %v2422 = vld [vmem:[#allocation10 + $0x180] sm:$0xff]
    %v2423 = vld [vmem:[#allocation10 + $0x188] sm:$0xff]
    %v2424 = vld [vmem:[#allocation10 + $0x190] sm:$0xff]
    %v2425 = vld [vmem:[#allocation10 + $0x198] sm:$0xff]
    %v2426 = vld [vmem:[#allocation10 + $0x1a0] sm:$0xff]
    %v2427 = vld [vmem:[#allocation10 + $0x1a8] sm:$0xff]
    %v2428 = vld [vmem:[#allocation10 + $0x1b0] sm:$0xff]
    %v2429 = vld [vmem:[#allocation10 + $0x1b8] sm:$0xff]
    %v2430 = vld [vmem:[#allocation10 + $0x1c0] sm:$0xff]
    %v2431 = vld [vmem:[#allocation10 + $0x1c8] sm:$0xff]
    %v2432 = vld [vmem:[#allocation10 + $0x1d0] sm:$0xff]
    %v2433 = vld [vmem:[#allocation10 + $0x1d8] sm:$0xff]
    %v2434 = vld [vmem:[#allocation10 + $0x1e0] sm:$0xff]
    %v2435 = vld [vmem:[#allocation10 + $0x1e8] sm:$0xff]
    %v2436 = vld [vmem:[#allocation10 + $0x1f0] sm:$0xff]
    %v2437 = vld [vmem:[#allocation10 + $0x1f8] sm:$0xff]
    %v2438 = vld [vmem:[%s6] sm:$0x3]
    %v2440 = vlaneseq
    %v2441 = vshrl.u32 %v2440, 7
    %v2442 = vsub.s32 0, %v2441
    %v2443 = vrot.slane %v2438, %v2442
    %v2444 = vlaneseq
    %v2445 = vshrl.u32 %v2444, 7
    %v2446 = vsub.s32 1, %v2445
    %v2447 = vrot.slane %v2438, %v2446
    %v2514 = vunpack.c.l.b16 %v2374
    %v2515 = vunpack.c.h.b16 %v2374
    %v2516 = vunpack.c.l.b16 %v2375
    %v2517 = vunpack.c.h.b16 %v2375
    %v2518 = vunpack.c.l.b16 %v2376
    %v2519 = vunpack.c.h.b16 %v2376
    %v2520 = vunpack.c.l.b16 %v2377
    %v2521 = vunpack.c.h.b16 %v2377
    %v2522 = vunpack.c.l.b16 %v2378
    %v2523 = vunpack.c.h.b16 %v2378
    %v2524 = vunpack.c.l.b16 %v2379
    %v2525 = vunpack.c.h.b16 %v2379
    %v2526 = vunpack.c.l.b16 %v2380
    %v2527 = vunpack.c.h.b16 %v2380
    %v2528 = vunpack.c.l.b16 %v2381
    %v2529 = vunpack.c.h.b16 %v2381
    %v2530 = vunpack.c.l.b16 %v2382
    %v2531 = vunpack.c.h.b16 %v2382
    %v2532 = vunpack.c.l.b16 %v2383
    %v2533 = vunpack.c.h.b16 %v2383
    %v2534 = vunpack.c.l.b16 %v2384
    %v2535 = vunpack.c.h.b16 %v2384
    %v2536 = vunpack.c.l.b16 %v2385
    %v2537 = vunpack.c.h.b16 %v2385
    %v2538 = vunpack.c.l.b16 %v2386
    %v2539 = vunpack.c.h.b16 %v2386
    %v2540 = vunpack.c.l.b16 %v2387
    %v2541 = vunpack.c.h.b16 %v2387
    %v2542 = vunpack.c.l.b16 %v2388
    %v2543 = vunpack.c.h.b16 %v2388
    %v2544 = vunpack.c.l.b16 %v2389
    %v2545 = vunpack.c.h.b16 %v2389
    %v2546 = vunpack.c.l.b16 %v2390
    %v2547 = vunpack.c.h.b16 %v2390
    %v2548 = vunpack.c.l.b16 %v2391
    %v2549 = vunpack.c.h.b16 %v2391
    %v2550 = vunpack.c.l.b16 %v2392
    %v2551 = vunpack.c.h.b16 %v2392
    %v2552 = vunpack.c.l.b16 %v2393
    %v2553 = vunpack.c.h.b16 %v2393
    %v2554 = vunpack.c.l.b16 %v2394
    %v2555 = vunpack.c.h.b16 %v2394
    %v2556 = vunpack.c.l.b16 %v2395
    %v2557 = vunpack.c.h.b16 %v2395
    %v2558 = vunpack.c.l.b16 %v2396
    %v2559 = vunpack.c.h.b16 %v2396
    %v2560 = vunpack.c.l.b16 %v2397
    %v2561 = vunpack.c.h.b16 %v2397
    %v2562 = vunpack.c.l.b16 %v2398
    %v2563 = vunpack.c.h.b16 %v2398
    %v2564 = vunpack.c.l.b16 %v2399
    %v2565 = vunpack.c.h.b16 %v2399
    %v2566 = vunpack.c.l.b16 %v2400
    %v2567 = vunpack.c.h.b16 %v2400
    %v2568 = vunpack.c.l.b16 %v2401
    %v2569 = vunpack.c.h.b16 %v2401
    %v2570 = vunpack.c.l.b16 %v2402
    %v2571 = vunpack.c.h.b16 %v2402
    %v2572 = vunpack.c.l.b16 %v2403
    %v2573 = vunpack.c.h.b16 %v2403
    %v2574 = vunpack.c.l.b16 %v2404
    %v2575 = vunpack.c.h.b16 %v2404
    %v2576 = vunpack.c.l.b16 %v2405
    %v2577 = vunpack.c.h.b16 %v2405
    %v2578 = vunpack.c.l.b16 %v2406
    %v2579 = vunpack.c.h.b16 %v2406
    %v2580 = vunpack.c.l.b16 %v2407
    %v2581 = vunpack.c.h.b16 %v2407
    %v2582 = vunpack.c.l.b16 %v2408
    %v2583 = vunpack.c.h.b16 %v2408
    %v2584 = vunpack.c.l.b16 %v2409
    %v2585 = vunpack.c.h.b16 %v2409
    %v2586 = vunpack.c.l.b16 %v2410
    %v2587 = vunpack.c.h.b16 %v2410
    %v2588 = vunpack.c.l.b16 %v2411
    %v2589 = vunpack.c.h.b16 %v2411
    %v2590 = vunpack.c.l.b16 %v2412
    %v2591 = vunpack.c.h.b16 %v2412
    %v2592 = vunpack.c.l.b16 %v2413
    %v2593 = vunpack.c.h.b16 %v2413
    %v2594 = vunpack.c.l.b16 %v2414
    %v2595 = vunpack.c.h.b16 %v2414
    %v2596 = vunpack.c.l.b16 %v2415
    %v2597 = vunpack.c.h.b16 %v2415
    %v2598 = vunpack.c.l.b16 %v2416
    %v2599 = vunpack.c.h.b16 %v2416
    %v2600 = vunpack.c.l.b16 %v2417
    %v2601 = vunpack.c.h.b16 %v2417
    %v2602 = vunpack.c.l.b16 %v2418
    %v2603 = vunpack.c.h.b16 %v2418
    %v2604 = vunpack.c.l.b16 %v2419
    %v2605 = vunpack.c.h.b16 %v2419
    %v2606 = vunpack.c.l.b16 %v2420
    %v2607 = vunpack.c.h.b16 %v2420
    %v2608 = vunpack.c.l.b16 %v2421
    %v2609 = vunpack.c.h.b16 %v2421
    %v2610 = vunpack.c.l.b16 %v2422
    %v2611 = vunpack.c.h.b16 %v2422
    %v2612 = vunpack.c.l.b16 %v2423
    %v2613 = vunpack.c.h.b16 %v2423
    %v2614 = vunpack.c.l.b16 %v2424
    %v2615 = vunpack.c.h.b16 %v2424
    %v2616 = vunpack.c.l.b16 %v2425
    %v2617 = vunpack.c.h.b16 %v2425
    %v2618 = vunpack.c.l.b16 %v2426
    %v2619 = vunpack.c.h.b16 %v2426
    %v2620 = vunpack.c.l.b16 %v2427
    %v2621 = vunpack.c.h.b16 %v2427
    %v2622 = vunpack.c.l.b16 %v2428
    %v2623 = vunpack.c.h.b16 %v2428
    %v2624 = vunpack.c.l.b16 %v2429
    %v2625 = vunpack.c.h.b16 %v2429
    %v2626 = vunpack.c.l.b16 %v2430
    %v2627 = vunpack.c.h.b16 %v2430
    %v2628 = vunpack.c.l.b16 %v2431
    %v2629 = vunpack.c.h.b16 %v2431
    %v2630 = vunpack.c.l.b16 %v2432
    %v2631 = vunpack.c.h.b16 %v2432
    %v2632 = vunpack.c.l.b16 %v2433
    %v2633 = vunpack.c.h.b16 %v2433
    %v2634 = vunpack.c.l.b16 %v2434
    %v2635 = vunpack.c.h.b16 %v2434
    %v2636 = vunpack.c.l.b16 %v2435
    %v2637 = vunpack.c.h.b16 %v2435
    %v2638 = vunpack.c.l.b16 %v2436
    %v2639 = vunpack.c.h.b16 %v2436
    %v2640 = vunpack.c.l.b16 %v2437
    %v2641 = vunpack.c.h.b16 %v2437
    %v2642 = vpack.c.b16 %v2516, %v2514
    %v2643 = vpack.c.b16 %v2517, %v2515
    %v2644 = vpack.c.b16 %v2520, %v2518
    %v2645 = vpack.c.b16 %v2521, %v2519
    %v2646 = vpack.c.b16 %v2524, %v2522
    %v2647 = vpack.c.b16 %v2525, %v2523
    %v2648 = vpack.c.b16 %v2528, %v2526
    %v2649 = vpack.c.b16 %v2529, %v2527
    %v2650 = vpack.c.b16 %v2532, %v2530
    %v2651 = vpack.c.b16 %v2533, %v2531
    %v2652 = vpack.c.b16 %v2536, %v2534
    %v2653 = vpack.c.b16 %v2537, %v2535
    %v2654 = vpack.c.b16 %v2540, %v2538
    %v2655 = vpack.c.b16 %v2541, %v2539
    %v2656 = vpack.c.b16 %v2544, %v2542
    %v2657 = vpack.c.b16 %v2545, %v2543
    %v2658 = vpack.c.b16 %v2548, %v2546
    %v2659 = vpack.c.b16 %v2549, %v2547
    %v2660 = vpack.c.b16 %v2552, %v2550
    %v2661 = vpack.c.b16 %v2553, %v2551
    %v2662 = vpack.c.b16 %v2556, %v2554
    %v2663 = vpack.c.b16 %v2557, %v2555
    %v2664 = vpack.c.b16 %v2560, %v2558
    %v2665 = vpack.c.b16 %v2561, %v2559
    %v2666 = vpack.c.b16 %v2564, %v2562
    %v2667 = vpack.c.b16 %v2565, %v2563
    %v2668 = vpack.c.b16 %v2568, %v2566
    %v2669 = vpack.c.b16 %v2569, %v2567
    %v2670 = vpack.c.b16 %v2572, %v2570
    %v2671 = vpack.c.b16 %v2573, %v2571
    %v2672 = vpack.c.b16 %v2576, %v2574
    %v2673 = vpack.c.b16 %v2577, %v2575
    %v2674 = vpack.c.b16 %v2580, %v2578
    %v2675 = vpack.c.b16 %v2581, %v2579
    %v2676 = vpack.c.b16 %v2584, %v2582
    %v2677 = vpack.c.b16 %v2585, %v2583
    %v2678 = vpack.c.b16 %v2588, %v2586
    %v2679 = vpack.c.b16 %v2589, %v2587
    %v2680 = vpack.c.b16 %v2592, %v2590
    %v2681 = vpack.c.b16 %v2593, %v2591
    %v2682 = vpack.c.b16 %v2596, %v2594
    %v2683 = vpack.c.b16 %v2597, %v2595
    %v2684 = vpack.c.b16 %v2600, %v2598
    %v2685 = vpack.c.b16 %v2601, %v2599
    %v2686 = vpack.c.b16 %v2604, %v2602
    %v2687 = vpack.c.b16 %v2605, %v2603
    %v2688 = vpack.c.b16 %v2608, %v2606
    %v2689 = vpack.c.b16 %v2609, %v2607
    %v2690 = vpack.c.b16 %v2612, %v2610
    %v2691 = vpack.c.b16 %v2613, %v2611
    %v2692 = vpack.c.b16 %v2616, %v2614
    %v2693 = vpack.c.b16 %v2617, %v2615
    %v2694 = vpack.c.b16 %v2620, %v2618
    %v2695 = vpack.c.b16 %v2621, %v2619
    %v2696 = vpack.c.b16 %v2624, %v2622
    %v2697 = vpack.c.b16 %v2625, %v2623
    %v2698 = vpack.c.b16 %v2628, %v2626
    %v2699 = vpack.c.b16 %v2629, %v2627
    %v2700 = vpack.c.b16 %v2632, %v2630
    %v2701 = vpack.c.b16 %v2633, %v2631
    %v2702 = vpack.c.b16 %v2636, %v2634
    %v2703 = vpack.c.b16 %v2637, %v2635
    %v2704 = vpack.c.b16 %v2640, %v2638
    %v2705 = vpack.c.b16 %v2641, %v2639
    %2770 = vmatprep.subr.bf16.mxu0 %v2657
    %2771 = vmatpush1.bf16.msra.mxu0 %v2656
    %2772 = vmatprep.subr.bf16.mxu0 %v2655
    %2773 = vmatpush1.bf16.msra.mxu0 %v2654
    %2774 = vmatprep.subr.bf16.mxu0 %v2653
    %2775 = vmatpush1.bf16.msra.mxu0 %v2652
    %2776 = vmatprep.subr.bf16.mxu0 %v2651
    %2777 = vmatpush1.bf16.msra.mxu0 %v2650
    %2778 = vmatprep.subr.bf16.mxu0 %v2649
    %2779 = vmatpush1.bf16.msra.mxu0 %v2648
    %2780 = vmatprep.subr.bf16.mxu0 %v2647
    %2781 = vmatpush1.bf16.msra.mxu0 %v2646
    %2782 = vmatprep.subr.bf16.mxu0 %v2645
    %2783 = vmatpush1.bf16.msra.mxu0 %v2644
    %2784 = vmatprep.subr.bf16.mxu0 %v2643
    %2785 = vmatpush1.bf16.msra.mxu0 %v2642
    %2786 = vmatprep.subr.bf16.mxu0 %v2673
    %2787 = vmatpush2.bf16.msra.mxu0 %v2672
    %2788 = vmatprep.subr.bf16.mxu0 %v2671
    %2789 = vmatpush2.bf16.msra.mxu0 %v2670
    %2790 = vmatprep.subr.bf16.mxu0 %v2669
    %2791 = vmatpush2.bf16.msra.mxu0 %v2668
    %2792 = vmatprep.subr.bf16.mxu0 %v2667
    %2793 = vmatpush2.bf16.msra.mxu0 %v2666
    %2794 = vmatprep.subr.bf16.mxu0 %v2665
    %2795 = vmatpush2.bf16.msra.mxu0 %v2664
    %2796 = vmatprep.subr.bf16.mxu0 %v2663
    %2797 = vmatpush2.bf16.msra.mxu0 %v2662
    %2798 = vmatprep.subr.bf16.mxu0 %v2661
    %2799 = vmatpush2.bf16.msra.mxu0 %v2660
    %2800 = vmatprep.subr.bf16.mxu0 %v2659
    %2801 = vmatpush2.bf16.msra.mxu0 %v2658
    %2802 = vmatprep.mubr.bf16.mxu0 %v2371
    %2803 = vmatmul.mubr.bf16.gmra.mxu0 %v2370
    %v2804 = vpop.f32.mrf.mxu0
    %v2805 = vadd.f32 %v2443, %v2804
    %v2806 = vpop.f32.mrf.mxu0
    %v2807 = vadd.f32 %v2447, %v2806
    %v2808 = vpop.f32.mrf.mxu0
    %v2809 = vadd.f32 %v2443, %v2808
    %v2810 = vpop.f32.mrf.mxu0
    %v2811 = vadd.f32 %v2447, %v2810
    %2812 = vdwg.mxu0
    %2813 = vmatprep.subr.bf16.mxu0 %v2689
    %2814 = vmatpush1.bf16.msra.mxu0 %v2688
    %2815 = vmatprep.subr.bf16.mxu0 %v2687
    %2816 = vmatpush1.bf16.msra.mxu0 %v2686
    %2817 = vmatprep.subr.bf16.mxu0 %v2685
    %2818 = vmatpush1.bf16.msra.mxu0 %v2684
    %2819 = vmatprep.subr.bf16.mxu0 %v2683
    %2820 = vmatpush1.bf16.msra.mxu0 %v2682
    %2821 = vmatprep.subr.bf16.mxu0 %v2681
    %2822 = vmatpush1.bf16.msra.mxu0 %v2680
    %2823 = vmatprep.subr.bf16.mxu0 %v2679
    %2824 = vmatpush1.bf16.msra.mxu0 %v2678
    %2825 = vmatprep.subr.bf16.mxu0 %v2677
    %2826 = vmatpush1.bf16.msra.mxu0 %v2676
    %2827 = vmatprep.subr.bf16.mxu0 %v2675
    %2828 = vmatpush1.bf16.msra.mxu0 %v2674
    %2829 = vmatprep.subr.bf16.mxu0 %v2705
    %2830 = vmatpush2.bf16.msra.mxu0 %v2704
    %2831 = vmatprep.subr.bf16.mxu0 %v2703
    %2832 = vmatpush2.bf16.msra.mxu0 %v2702
    %2833 = vmatprep.subr.bf16.mxu0 %v2701
    %2834 = vmatpush2.bf16.msra.mxu0 %v2700
    %2835 = vmatprep.subr.bf16.mxu0 %v2699
    %2836 = vmatpush2.bf16.msra.mxu0 %v2698
    %2837 = vmatprep.subr.bf16.mxu0 %v2697
    %2838 = vmatpush2.bf16.msra.mxu0 %v2696
    %2839 = vmatprep.subr.bf16.mxu0 %v2695
    %2840 = vmatpush2.bf16.msra.mxu0 %v2694
    %2841 = vmatprep.subr.bf16.mxu0 %v2693
    %2842 = vmatpush2.bf16.msra.mxu0 %v2692
    %2843 = vmatprep.subr.bf16.mxu0 %v2691
    %2844 = vmatpush2.bf16.msra.mxu0 %v2690
    %2845 = vmatprep.mubr.bf16.mxu0 %v2373
    %2846 = vmatmul.mubr.bf16.gmra.mxu0 %v2372
    %v2847 = vpop.f32.mrf.mxu0
    %v2848 = vadd.f32 %v2805, %v2847
    %v2849 = vpop.f32.mrf.mxu0
    %v2850 = vadd.f32 %v2807, %v2849
    %v2851 = vpop.f32.mrf.mxu0
    %v2852 = vadd.f32 %v2809, %v2851
    %v2853 = vpop.f32.mrf.mxu0
    %v2854 = vadd.f32 %v2811, %v2853
    %2855 = vdwg.mxu0
    %v2856 = vpack.c.bf16 %v2852, %v2848
    %v2857 = vpack.c.bf16 %v2854, %v2850
    %v2858 = vmul.bf16 %v2856, 1009007652
    %v2859 = vmul.bf16 %v2857, 1009007652
    %v2860 = vmax.bf16 %v2856, %v2858
    %v2861 = vmax.bf16 %v2857, %v2859
    %v2862 = vld [vmem:[#allocation11] sm:$0xf]
    %v2863 = vld [vmem:[#allocation11 + $0x4] sm:$0xf]
    %v2864 = vld [vmem:[#allocation11 + $0x8] sm:$0xf]
    %v2865 = vld [vmem:[#allocation11 + $0xc] sm:$0xf]
    %v2866 = vld [vmem:[#allocation11 + $0x10] sm:$0xf]
    %v2867 = vld [vmem:[#allocation11 + $0x14] sm:$0xf]
    %v2868 = vld [vmem:[#allocation11 + $0x18] sm:$0xf]
    %v2869 = vld [vmem:[#allocation11 + $0x1c] sm:$0xf]
    %v2870 = vld [vmem:[#allocation11 + $0x20] sm:$0xf]
    %v2871 = vld [vmem:[#allocation11 + $0x24] sm:$0xf]
    %v2872 = vld [vmem:[#allocation11 + $0x28] sm:$0xf]
    %v2873 = vld [vmem:[#allocation11 + $0x2c] sm:$0xf]
    %v2874 = vld [vmem:[#allocation11 + $0x30] sm:$0xf]
    %v2875 = vld [vmem:[#allocation11 + $0x34] sm:$0xf]
    %v2876 = vld [vmem:[#allocation11 + $0x38] sm:$0xf]
    %v2877 = vld [vmem:[#allocation11 + $0x3c] sm:$0xf]
    %v2878 = vld [vmem:[#allocation11 + $0x40] sm:$0xf]
    %v2879 = vld [vmem:[#allocation11 + $0x44] sm:$0xf]
    %v2880 = vld [vmem:[#allocation11 + $0x48] sm:$0xf]
    %v2881 = vld [vmem:[#allocation11 + $0x4c] sm:$0xf]
    %v2882 = vld [vmem:[#allocation11 + $0x50] sm:$0xf]
    %v2883 = vld [vmem:[#allocation11 + $0x54] sm:$0xf]
    %v2884 = vld [vmem:[#allocation11 + $0x58] sm:$0xf]
    %v2885 = vld [vmem:[#allocation11 + $0x5c] sm:$0xf]
    %v2886 = vld [vmem:[#allocation11 + $0x60] sm:$0xf]
    %v2887 = vld [vmem:[#allocation11 + $0x64] sm:$0xf]
    %v2888 = vld [vmem:[#allocation11 + $0x68] sm:$0xf]
    %v2889 = vld [vmem:[#allocation11 + $0x6c] sm:$0xf]
    %v2890 = vld [vmem:[#allocation11 + $0x70] sm:$0xf]
    %v2891 = vld [vmem:[#allocation11 + $0x74] sm:$0xf]
    %v2892 = vld [vmem:[#allocation11 + $0x78] sm:$0xf]
    %v2893 = vld [vmem:[#allocation11 + $0x7c] sm:$0xf]
    %v2894 = vld [vmem:[%s8] sm:$0x1]
    %v2896 = vlaneseq
    %v2897 = vshrl.u32 %v2896, 7
    %v2898 = vsub.s32 0, %v2897
    %v2899 = vrot.slane %v2894, %v2898
    %v2933 = vunpack.c.l.b16 %v2862
    %v2934 = vunpack.c.l.b16 %v2863
    %v2935 = vunpack.c.l.b16 %v2864
    %v2936 = vunpack.c.l.b16 %v2865
    %v2937 = vunpack.c.l.b16 %v2866
    %v2938 = vunpack.c.l.b16 %v2867
    %v2939 = vunpack.c.l.b16 %v2868
    %v2940 = vunpack.c.l.b16 %v2869
    %v2941 = vunpack.c.l.b16 %v2870
    %v2942 = vunpack.c.l.b16 %v2871
    %v2943 = vunpack.c.l.b16 %v2872
    %v2944 = vunpack.c.l.b16 %v2873
    %v2945 = vunpack.c.l.b16 %v2874
    %v2946 = vunpack.c.l.b16 %v2875
    %v2947 = vunpack.c.l.b16 %v2876
    %v2948 = vunpack.c.l.b16 %v2877
    %v2949 = vunpack.c.l.b16 %v2878
    %v2950 = vunpack.c.l.b16 %v2879
    %v2951 = vunpack.c.l.b16 %v2880
    %v2952 = vunpack.c.l.b16 %v2881
    %v2953 = vunpack.c.l.b16 %v2882
    %v2954 = vunpack.c.l.b16 %v2883
    %v2955 = vunpack.c.l.b16 %v2884
    %v2956 = vunpack.c.l.b16 %v2885
    %v2957 = vunpack.c.l.b16 %v2886
    %v2958 = vunpack.c.l.b16 %v2887
    %v2959 = vunpack.c.l.b16 %v2888
    %v2960 = vunpack.c.l.b16 %v2889
    %v2961 = vunpack.c.l.b16 %v2890
    %v2962 = vunpack.c.l.b16 %v2891
    %v2963 = vunpack.c.l.b16 %v2892
    %v2964 = vunpack.c.l.b16 %v2893
    %v2965 = vpack.c.b16 %v2934, %v2933
    %v2966 = vpack.c.b16 %v2936, %v2935
    %v2967 = vpack.c.b16 %v2938, %v2937
    %v2968 = vpack.c.b16 %v2940, %v2939
    %v2969 = vpack.c.b16 %v2942, %v2941
    %v2970 = vpack.c.b16 %v2944, %v2943
    %v2971 = vpack.c.b16 %v2946, %v2945
    %v2972 = vpack.c.b16 %v2948, %v2947
    %v2973 = vpack.c.b16 %v2950, %v2949
    %v2974 = vpack.c.b16 %v2952, %v2951
    %v2975 = vpack.c.b16 %v2954, %v2953
    %v2976 = vpack.c.b16 %v2956, %v2955
    %v2977 = vpack.c.b16 %v2958, %v2957
    %v2978 = vpack.c.b16 %v2960, %v2959
    %v2979 = vpack.c.b16 %v2962, %v2961
    %v2980 = vpack.c.b16 %v2964, %v2963
    %2997 = vmatprep.subr.bf16.mxu0 0
    %2998 = vmatpush1.bf16.msra.mxu0 %v2972
    %2999 = vmatprep.subr.bf16.mxu0 0
    %3000 = vmatpush1.bf16.msra.mxu0 %v2971
    %3001 = vmatprep.subr.bf16.mxu0 0
    %3002 = vmatpush1.bf16.msra.mxu0 %v2970
    %3003 = vmatprep.subr.bf16.mxu0 0
    %3004 = vmatpush1.bf16.msra.mxu0 %v2969
    %3005 = vmatprep.subr.bf16.mxu0 0
    %3006 = vmatpush1.bf16.msra.mxu0 %v2968
    %3007 = vmatprep.subr.bf16.mxu0 0
    %3008 = vmatpush1.bf16.msra.mxu0 %v2967
    %3009 = vmatprep.subr.bf16.mxu0 0
    %3010 = vmatpush1.bf16.msra.mxu0 %v2966
    %3011 = vmatprep.subr.bf16.mxu0 0
    %3012 = vmatpush1.bf16.msra.mxu0 %v2965
    %3013 = vmatprep.subr.bf16.mxu0 0
    %3014 = vmatpush2.bf16.msra.mxu0 %v2980
    %3015 = vmatprep.subr.bf16.mxu0 0
    %3016 = vmatpush2.bf16.msra.mxu0 %v2979
    %3017 = vmatprep.subr.bf16.mxu0 0
    %3018 = vmatpush2.bf16.msra.mxu0 %v2978
    %3019 = vmatprep.subr.bf16.mxu0 0
    %3020 = vmatpush2.bf16.msra.mxu0 %v2977
    %3021 = vmatprep.subr.bf16.mxu0 0
    %3022 = vmatpush2.bf16.msra.mxu0 %v2976
    %3023 = vmatprep.subr.bf16.mxu0 0
    %3024 = vmatpush2.bf16.msra.mxu0 %v2975
    %3025 = vmatprep.subr.bf16.mxu0 0
    %3026 = vmatpush2.bf16.msra.mxu0 %v2974
    %3027 = vmatprep.subr.bf16.mxu0 0
    %3028 = vmatpush2.bf16.msra.mxu0 %v2973
    %3029 = vmatprep.mubr.bf16.mxu0 %v2861
    %3030 = vmatmul.mubr.bf16.gmra.mxu0 %v2860
    %v3031 = vpop.f32.mrf.mxu0
    %v3032 = vadd.f32 %v2899, %v3031
    %v3033 = vpop.f32.mrf.mxu0
    %v3034 = vpop.f32.mrf.mxu0
    %v3035 = vadd.f32 %v2899, %v3034
    %v3036 = vpop.f32.mrf.mxu0
    %3037 = vdwg.mxu0
    %3038 = vmax.xlane.f32.xlu0 %v3032
    %v3039 = vpop.xlane.xlu0 %3038
    %3040 = vmax.xlane.f32.xlu0 %v3035
    %v3041 = vpop.xlane.xlu0 %3040
    %v3042 = vsub.f32 %v3032, %v3039
    %v3043 = vsub.f32 %v3035, %v3041
    %v3044 = vmul.f32 %v3042, 1.442695
    %v3045 = vpow.pop %v3044
    %v3046 = vmul.f32 %v3043, 1.442695
    %v3047 = vpow.pop %v3046
    %3048 = vadd.xlane.f32.xlu0 %v3045
    %v3049 = vpop.xlane.xlu0 %3048
    %3050 = vadd.xlane.f32.xlu0 %v3047
    %v3051 = vpop.xlane.xlu0 %3050
    %v3052 = vrcp.pop %v3049
    %v3053 = vmul.f32 %v3045, %v3052
    %v3054 = vrcp.pop %v3051
    %v3055 = vmul.f32 %v3047, %v3054
    %3056 = vst [vmem:[#allocation13] sm:$0xff] %v3053
    %3057 = vst [vmem:[#allocation13 + $0x8] sm:$0xff] %v3055
    // Predicated region
    $region62: #{tpu_custom_call.1} parent=1 // pred_check
      _
    $region63: #{tpu_custom_call.1} parent=1 // pred_check_branch
      %3059 = sbr.rel (0) target = $region65
    $region64: #{tpu_custom_call.1} parent=1 // pred_region
      %s3061 = ssub.s32 256, 256
      %3062 = vsyncadd [#allocation4], %s3061
      %s3063 = sshll.u32 [#allocation13], 4
      %s3064 = int_to_ptr.vmem [resolvable:$true] %s3063
      %3069 = dma.vmem_to_hbm [thread:$0]  %s3064, 256, %s9, [#allocation4], 128, 128, 8
    $region65: #{tpu_custom_call.1} parent=1 // pred_fallthru
      _
    // Predicated region
    $region66: #{tpu_custom_call.1} parent=1 // pred_check
      _
    $region67: #{tpu_custom_call.1} parent=1 // pred_check_branch
      %3071 = sbr.rel (0) target = $region69
    $region68: #{tpu_custom_call.1} parent=1 // pred_region
      %3072 = dma.done [#allocation4], 256
    $region69: #{tpu_custom_call.1} parent=1 // pred_fallthru
      _
    %3073 = vsyncpa [#allocation3], 1
    %3074 = vsyncpa [#allocation6], 1
    %3075 = vsyncpa [#allocation9], 1
    %3076 = vsyncpa [#allocation12], 1
    %3077 = vsyncpa [#allocation4], 1

</llo_original>
